<compile_context>
chip_gen: v6e
topology: v6e:2x2x1
jax: 0.10.0
libtpu: 0.0.40
codegen_flags: <defaults>
</compile_context>

<pallas_src>
import functools

import jax
import jax.numpy as jnp
from jax import lax
from jax.experimental import pallas as pl
from jax.experimental.pallas import tpu as pltpu


def _mlp_kernel(xT_ref,
                w1T_ref, b1_ref,
                w2T_ref, b2_ref,
                w3T_ref, b3_ref,
                w4T_ref, b4_ref,
                oT_ref):
    # All refs are feature-major: (features, batch_tile); batch tile sits on
    # the lane axis -> lane-dense vregs everywhere.
    dot = functools.partial(jnp.dot,
                            preferred_element_type=jnp.float32,
                            precision=lax.Precision.HIGHEST)

    h = jnp.tanh(dot(w1T_ref[...], xT_ref[...]) + b1_ref[...])   # (H, bn)
    h = jnp.tanh(dot(w2T_ref[...], h) + b2_ref[...])             # (H, bn)
    h = jnp.tanh(dot(w3T_ref[...], h) + b3_ref[...])             # (H, bn)
    out = dot(w4T_ref[...], h) + b4_ref[...]                     # (O, bn)
    oT_ref[...] = out.astype(oT_ref.dtype)


def _resident_spec(shape):
    # Whole-array block, constant index_map: fetched once, resident in VMEM.
    nd = len(shape)
    return pl.BlockSpec(shape, lambda i, _nd=nd: (0,) * _nd)


@functools.partial(jax.jit, static_argnames=("block_n",))
def mlp_forward(x, params, block_n=1024):
    """Fused 4-layer MLP forward pass.

    x: (N, input_dim) float32
    params: dict with w1..w4 of shape (in, out) and b1..b4 of shape (1, out)
    Returns (N, output_dim) float32.
    """
    n, input_dim = x.shape
    output_dim = params["w4"].shape[1]

    # Adaptive batch tile: >=128 lanes, <=block_n, and no bigger than the
    # 128-rounded batch (so tiny batches do not pad to a full 1024-row tile).
    n_128 = ((n + 127) // 128) * 128
    bn = max(128, min(block_n, n_128))
    n_pad = pl.cdiv(n, bn) * bn

    # Feature-major input, batch padded to a multiple of bn.
    xT = jnp.pad(x.T, ((0, 0), (0, n_pad - n)))          # (input_dim, n_pad)

    # Transposed weights (out, in) and column-vector biases (out, 1).
    w1T, b1 = params["w1"].T, params["b1"].T
    w2T, b2 = params["w2"].T, params["b2"].T
    w3T, b3 = params["w3"].T, params["b3"].T
    w4T, b4 = params["w4"].T, params["b4"].T

    grid = (n_pad // bn,)

    oT = pl.pallas_call(
        _mlp_kernel,
        out_shape=jax.ShapeDtypeStruct((output_dim, n_pad), x.dtype),
        grid=grid,
        in_specs=[
            pl.BlockSpec((input_dim, bn), lambda i: (0, i)),
            _resident_spec(w1T.shape), _resident_spec(b1.shape),
            _resident_spec(w2T.shape), _resident_spec(b2.shape),
            _resident_spec(w3T.shape), _resident_spec(b3.shape),
            _resident_spec(w4T.shape), _resident_spec(b4.shape),
        ],
        out_specs=pl.BlockSpec((output_dim, bn), lambda i: (0, i)),
        compiler_params=pltpu.CompilerParams(
            dimension_semantics=("parallel",)),
    )(xT, w1T, b1, w2T, b2, w3T, b3, w4T, b4)

    # Drop the batch padding and return row-major (N, output_dim).
    return oT[:, :n].T


def init_params(key, input_dim, hidden_dim, output_dim):
    """Deterministic init mimicking nn.Linear default (uniform +-1/sqrt(fan_in))."""
    dims = [(input_dim, hidden_dim),
            (hidden_dim, hidden_dim),
            (hidden_dim, hidden_dim),
            (hidden_dim, output_dim)]
    params = {}
    for idx, (fan_in, fan_out) in enumerate(dims, start=1):
        key, kw, kb = jax.random.split(key, 3)
        bound = 1.0 / jnp.sqrt(jnp.float32(fan_in))
        params[f"w{idx}"] = jax.random.uniform(
            kw, (fan_in, fan_out), jnp.float32, -bound, bound)
        params[f"b{idx}"] = jax.random.uniform(
            kb, (1, fan_out), jnp.float32, -bound, bound)
    return params


def mlp_reference(x, params):
    h = jnp.tanh(x @ params["w1"] + params["b1"])
    h = jnp.tanh(h @ params["w2"] + params["b2"])
    h = jnp.tanh(h @ params["w3"] + params["b3"])
    return h @ params["w4"] + params["b4"]


if __name__ == "__main__":
    key = jax.random.PRNGKey(0)

    input_dim, hidden_dim, output_dim = 4, 32, 2
    batch = 16

    kx, kp = jax.random.split(key)
    x = jax.random.normal(kx, (batch, input_dim), jnp.float32)
    params = init_params(kp, input_dim, hidden_dim, output_dim)

    # Small-batch run (padding path: 16 rows -> one 128-row block).
    out = jax.block_until_ready(mlp_forward(x, params))
    ref = mlp_reference(x, params)
    assert out.shape == (batch, output_dim)
    assert jnp.allclose(out, ref, atol=1e-4, rtol=1e-4), "mismatch vs reference"

    # Multi-block run (grid loop: 2048 rows -> 2 grid steps of 1024).
    x_big = jax.random.normal(kx, (2048, input_dim), jnp.float32)
    out_big = jax.block_until_ready(mlp_forward(x_big, params))
    ref_big = mlp_reference(x_big, params)
    assert jnp.allclose(out_big, ref_big, atol=1e-4, rtol=1e-4), "mismatch (big)"

    print("KERNEL_OK")
</pallas_src>

<mosaic_0001>
module attributes {stable_mosaic.version = 11 : i64} {
  func.func @_mlp_kernel(%arg0: i32, %arg1: memref<4x128xf32, #tpu.memory_space<vmem>>, %arg2: memref<32x4xf32, #tpu.memory_space<vmem>>, %arg3: memref<32x1xf32, #tpu.memory_space<vmem>>, %arg4: memref<32x32xf32, #tpu.memory_space<vmem>>, %arg5: memref<32x1xf32, #tpu.memory_space<vmem>>, %arg6: memref<32x32xf32, #tpu.memory_space<vmem>>, %arg7: memref<32x1xf32, #tpu.memory_space<vmem>>, %arg8: memref<2x32xf32, #tpu.memory_space<vmem>>, %arg9: memref<2x1xf32, #tpu.memory_space<vmem>>, %arg10: memref<2x128xf32, #tpu.memory_space<vmem>>) attributes {dimension_semantics = [#tpu.dimension_semantics<parallel>], iteration_bounds = array<i64: 1>, scalar_prefetch = 0 : i64, scratch_operands = 0 : i64, tpu.core_type = #tpu.core_type<tc>, window_params = [{transform_indices = @transform_0, window_bounds = array<i64: 4, 128>}, {pipeline_mode = #tpu.pipeline_mode<synchronous>, transform_indices = @transform_1, window_bounds = array<i64: 32, 4>}, {pipeline_mode = #tpu.pipeline_mode<synchronous>, transform_indices = @transform_2, window_bounds = array<i64: 32, 1>}, {pipeline_mode = #tpu.pipeline_mode<synchronous>, transform_indices = @transform_3, window_bounds = array<i64: 32, 32>}, {pipeline_mode = #tpu.pipeline_mode<synchronous>, transform_indices = @transform_4, window_bounds = array<i64: 32, 1>}, {pipeline_mode = #tpu.pipeline_mode<synchronous>, transform_indices = @transform_5, window_bounds = array<i64: 32, 32>}, {pipeline_mode = #tpu.pipeline_mode<synchronous>, transform_indices = @transform_6, window_bounds = array<i64: 32, 1>}, {pipeline_mode = #tpu.pipeline_mode<synchronous>, transform_indices = @transform_7, window_bounds = array<i64: 2, 32>}, {pipeline_mode = #tpu.pipeline_mode<synchronous>, transform_indices = @transform_8, window_bounds = array<i64: 2, 1>}, {transform_indices = @transform_9, window_bounds = array<i64: 2, 128>}]} {
    %c0 = arith.constant 0 : index
    %c0_0 = arith.constant 0 : index
    %0 = vector.load %arg2[%c0, %c0_0] : memref<32x4xf32, #tpu.memory_space<vmem>>, vector<32x4xf32>
    %c0_1 = arith.constant 0 : index
    %c0_2 = arith.constant 0 : index
    %1 = vector.load %arg1[%c0_1, %c0_2] : memref<4x128xf32, #tpu.memory_space<vmem>>, vector<4x128xf32>
    %cst = arith.constant dense<0.000000e+00> : vector<32x128xf32>
    %2 = tpu.matmul %0, %1, %cst {dimension_numbers = #tpu.dot_dimension_numbers<[1], [0], [0], [1], [0, 0, 1, 1], [], []>, precision = #tpu.contract_precision<fp32>} : vector<32x4xf32>, vector<4x128xf32>, vector<32x128xf32> -> vector<32x128xf32>
    %c0_3 = arith.constant 0 : index
    %c0_4 = arith.constant 0 : index
    %3 = vector.load %arg3[%c0_3, %c0_4] : memref<32x1xf32, #tpu.memory_space<vmem>>, vector<32x1xf32>
    %4 = vector.broadcast %3 : vector<32x1xf32> to vector<32x128xf32>
    %5 = arith.addf %2, %4 : vector<32x128xf32>
    %6 = math.tanh %5 : vector<32x128xf32>
    %c0_5 = arith.constant 0 : index
    %c0_6 = arith.constant 0 : index
    %7 = vector.load %arg4[%c0_5, %c0_6] : memref<32x32xf32, #tpu.memory_space<vmem>>, vector<32x32xf32>
    %cst_7 = arith.constant dense<0.000000e+00> : vector<32x128xf32>
    %8 = tpu.matmul %7, %6, %cst_7 {dimension_numbers = #tpu.dot_dimension_numbers<[1], [0], [0], [1], [0, 0, 1, 1], [], []>, precision = #tpu.contract_precision<fp32>} : vector<32x32xf32>, vector<32x128xf32>, vector<32x128xf32> -> vector<32x128xf32>
    %c0_8 = arith.constant 0 : index
    %c0_9 = arith.constant 0 : index
    %9 = vector.load %arg5[%c0_8, %c0_9] : memref<32x1xf32, #tpu.memory_space<vmem>>, vector<32x1xf32>
    %10 = vector.broadcast %9 : vector<32x1xf32> to vector<32x128xf32>
    %11 = arith.addf %8, %10 : vector<32x128xf32>
    %12 = math.tanh %11 : vector<32x128xf32>
    %c0_10 = arith.constant 0 : index
    %c0_11 = arith.constant 0 : index
    %13 = vector.load %arg6[%c0_10, %c0_11] : memref<32x32xf32, #tpu.memory_space<vmem>>, vector<32x32xf32>
    %cst_12 = arith.constant dense<0.000000e+00> : vector<32x128xf32>
    %14 = tpu.matmul %13, %12, %cst_12 {dimension_numbers = #tpu.dot_dimension_numbers<[1], [0], [0], [1], [0, 0, 1, 1], [], []>, precision = #tpu.contract_precision<fp32>} : vector<32x32xf32>, vector<32x128xf32>, vector<32x128xf32> -> vector<32x128xf32>
    %c0_13 = arith.constant 0 : index
    %c0_14 = arith.constant 0 : index
    %15 = vector.load %arg7[%c0_13, %c0_14] : memref<32x1xf32, #tpu.memory_space<vmem>>, vector<32x1xf32>
    %16 = vector.broadcast %15 : vector<32x1xf32> to vector<32x128xf32>
    %17 = arith.addf %14, %16 : vector<32x128xf32>
    %18 = math.tanh %17 : vector<32x128xf32>
    %c0_15 = arith.constant 0 : index
    %c0_16 = arith.constant 0 : index
    %19 = vector.load %arg8[%c0_15, %c0_16] : memref<2x32xf32, #tpu.memory_space<vmem>>, vector<2x32xf32>
    %cst_17 = arith.constant dense<0.000000e+00> : vector<2x128xf32>
    %20 = tpu.matmul %19, %18, %cst_17 {dimension_numbers = #tpu.dot_dimension_numbers<[1], [0], [0], [1], [0, 0, 1, 1], [], []>, precision = #tpu.contract_precision<fp32>} : vector<2x32xf32>, vector<32x128xf32>, vector<2x128xf32> -> vector<2x128xf32>
    %c0_18 = arith.constant 0 : index
    %c0_19 = arith.constant 0 : index
    %21 = vector.load %arg9[%c0_18, %c0_19] : memref<2x1xf32, #tpu.memory_space<vmem>>, vector<2x1xf32>
    %22 = vector.broadcast %21 : vector<2x1xf32> to vector<2x128xf32>
    %23 = arith.addf %20, %22 : vector<2x128xf32>
    %c0_20 = arith.constant 0 : index
    %c0_21 = arith.constant 0 : index
    %24 = vector.load %arg10[%c0_20, %c0_21] : memref<2x128xf32, #tpu.memory_space<vmem>>, vector<2x128xf32>
    tpu.vector_store %arg10[%c0_20, %c0_21], %23 {strides = array<i32>} : memref<2x128xf32, #tpu.memory_space<vmem>>, vector<2x128xf32>,
    return
  }
  func.func @transform_0(%arg0: i32) -> (i32, i32) {
    %c0_i32 = arith.constant 0 : i32
    %c0_i32_0 = arith.constant 0 : i32
    return %c0_i32, %arg0 : i32, i32
  }
  func.func @transform_1(%arg0: i32) -> (i32, i32) {
    %c0_i32 = arith.constant 0 : i32
    %c0_i32_0 = arith.constant 0 : i32
    %c0_i32_1 = arith.constant 0 : i32
    return %c0_i32, %c0_i32_0 : i32, i32
  }
  func.func @transform_2(%arg0: i32) -> (i32, i32) {
    %c0_i32 = arith.constant 0 : i32
    %c0_i32_0 = arith.constant 0 : i32
    %c0_i32_1 = arith.constant 0 : i32
    return %c0_i32, %c0_i32_0 : i32, i32
  }
  func.func @transform_3(%arg0: i32) -> (i32, i32) {
    %c0_i32 = arith.constant 0 : i32
    %c0_i32_0 = arith.constant 0 : i32
    %c0_i32_1 = arith.constant 0 : i32
    return %c0_i32, %c0_i32_0 : i32, i32
  }
  func.func @transform_4(%arg0: i32) -> (i32, i32) {
    %c0_i32 = arith.constant 0 : i32
    %c0_i32_0 = arith.constant 0 : i32
    %c0_i32_1 = arith.constant 0 : i32
    return %c0_i32, %c0_i32_0 : i32, i32
  }
  func.func @transform_5(%arg0: i32) -> (i32, i32) {
    %c0_i32 = arith.constant 0 : i32
    %c0_i32_0 = arith.constant 0 : i32
    %c0_i32_1 = arith.constant 0 : i32
    return %c0_i32, %c0_i32_0 : i32, i32
  }
  func.func @transform_6(%arg0: i32) -> (i32, i32) {
    %c0_i32 = arith.constant 0 : i32
    %c0_i32_0 = arith.constant 0 : i32
    %c0_i32_1 = arith.constant 0 : i32
    return %c0_i32, %c0_i32_0 : i32, i32
  }
  func.func @transform_7(%arg0: i32) -> (i32, i32) {
    %c0_i32 = arith.constant 0 : i32
    %c0_i32_0 = arith.constant 0 : i32
    %c0_i32_1 = arith.constant 0 : i32
    return %c0_i32, %c0_i32_0 : i32, i32
  }
  func.func @transform_8(%arg0: i32) -> (i32, i32) {
    %c0_i32 = arith.constant 0 : i32
    %c0_i32_0 = arith.constant 0 : i32
    %c0_i32_1 = arith.constant 0 : i32
    return %c0_i32, %c0_i32_0 : i32, i32
  }
  func.func @transform_9(%arg0: i32) -> (i32, i32) {
    %c0_i32 = arith.constant 0 : i32
    %c0_i32_0 = arith.constant 0 : i32
    return %c0_i32, %arg0 : i32, i32
  }
}

</mosaic_0001>

<llo_original>
// kernel: mlp_forward.1
$region0: #{mlp_forward.1}
  #allocation0 [shape = 'u32[]', space=smem, size = 0x4, offset = 0x4, fixed_abs, tag = 'smem constant byte address 0x4 - core index']
  #allocation1 [shape = 'u32[144,128]{1,0:T(1,128)}', space=vmem, size = 0x12000, scoped, tag = 'internal scratch']
  %s0 = inlined_call_operand.vmem [shape: f32[4,128], index: 0, kind: input, shape index: {}]
  %s1 = inlined_call_operand.vmem [shape: f32[32,4], index: 1, kind: input, shape index: {}]
  %s2 = inlined_call_operand.vmem [shape: f32[32,1], index: 2, kind: input, shape index: {}]
  %s3 = inlined_call_operand.vmem [shape: f32[32,32], index: 3, kind: input, shape index: {}]
  %s4 = inlined_call_operand.vmem [shape: f32[32,1], index: 4, kind: input, shape index: {}]
  %s5 = inlined_call_operand.vmem [shape: f32[32,32], index: 5, kind: input, shape index: {}]
  %s6 = inlined_call_operand.vmem [shape: f32[32,1], index: 6, kind: input, shape index: {}]
  %s7 = inlined_call_operand.vmem [shape: f32[2,32], index: 7, kind: input, shape index: {}]
  %s8 = inlined_call_operand.vmem [shape: f32[2,1], index: 8, kind: input, shape index: {}]
  %s9 = inlined_call_operand.vmem [shape: f32[2,128], index: 9, kind: output, shape index: {}]
  %s10 = sld [smem:[#allocation0]]
  $region46: #{mlp_forward.1} parent=0
    _
  %s12 = ssub.s32 1, %s10
  %s13 = scalar_select 0, %s12, %s10
  // Predicated region
  $region2: #{mlp_forward.1} parent=0 // pred_check
    _
  $region3: #{mlp_forward.1} parent=0 // pred_check_branch
    %15 = sbr.rel (0) target = $region5
  $region4: #{mlp_forward.1} parent=0 // pred_region
    _
  $region5: #{mlp_forward.1} parent=0 // pred_fallthru
    _
  // Predicated region
  $region6: #{mlp_forward.1} parent=0 // pred_check
    _
  $region7: #{mlp_forward.1} parent=0 // pred_check_branch
    %17 = sbr.rel (0) target = $region9
  $region8: #{mlp_forward.1} parent=0 // pred_region
    _
  $region9: #{mlp_forward.1} parent=0 // pred_fallthru
    _
  // Predicated region
  $region10: #{mlp_forward.1} parent=0 // pred_check
    _
  $region11: #{mlp_forward.1} parent=0 // pred_check_branch
    %19 = sbr.rel (0) target = $region13
  $region12: #{mlp_forward.1} parent=0 // pred_region
    _
  $region13: #{mlp_forward.1} parent=0 // pred_fallthru
    _
  // Predicated region
  $region14: #{mlp_forward.1} parent=0 // pred_check
    _
  $region15: #{mlp_forward.1} parent=0 // pred_check_branch
    %21 = sbr.rel (0) target = $region17
  $region16: #{mlp_forward.1} parent=0 // pred_region
    _
  $region17: #{mlp_forward.1} parent=0 // pred_fallthru
    _
  // Predicated region
  $region18: #{mlp_forward.1} parent=0 // pred_check
    _
  $region19: #{mlp_forward.1} parent=0 // pred_check_branch
    %23 = sbr.rel (0) target = $region21
  $region20: #{mlp_forward.1} parent=0 // pred_region
    _
  $region21: #{mlp_forward.1} parent=0 // pred_fallthru
    _
  // Predicated region
  $region22: #{mlp_forward.1} parent=0 // pred_check
    _
  $region23: #{mlp_forward.1} parent=0 // pred_check_branch
    %25 = sbr.rel (0) target = $region25
  $region24: #{mlp_forward.1} parent=0 // pred_region
    _
  $region25: #{mlp_forward.1} parent=0 // pred_fallthru
    _
  // Predicated region
  $region26: #{mlp_forward.1} parent=0 // pred_check
    _
  $region27: #{mlp_forward.1} parent=0 // pred_check_branch
    %27 = sbr.rel (0) target = $region29
  $region28: #{mlp_forward.1} parent=0 // pred_region
    _
  $region29: #{mlp_forward.1} parent=0 // pred_fallthru
    _
  // Predicated region
  $region30: #{mlp_forward.1} parent=0 // pred_check
    _
  $region31: #{mlp_forward.1} parent=0 // pred_check_branch
    %29 = sbr.rel (0) target = $region33
  $region32: #{mlp_forward.1} parent=0 // pred_region
    _
  $region33: #{mlp_forward.1} parent=0 // pred_fallthru
    _
  // Predicated region
  $region34: #{mlp_forward.1} parent=0 // pred_check
    _
  $region35: #{mlp_forward.1} parent=0 // pred_check_branch
    %31 = sbr.rel (0) target = $region37
  $region36: #{mlp_forward.1} parent=0 // pred_region
    _
  $region37: #{mlp_forward.1} parent=0 // pred_fallthru
    _
  %v32 = vld [vmem:[%s1] sm:$0xff]
  %v33 = vld [vmem:[%s1 + $0x8] sm:$0xff]
  %v34 = vld [vmem:[%s1 + $0x10] sm:$0xff]
  %v35 = vld [vmem:[%s1 + $0x18] sm:$0xff]
  %v36 = vld [vmem:[%s0] sm:$0xf]
  %v37 = vld [vmem:[%s2] sm:$0xff]
  %v38 = vld [vmem:[%s2 + $0x8] sm:$0xff]
  %v39 = vld [vmem:[%s2 + $0x10] sm:$0xff]
  %v40 = vld [vmem:[%s2 + $0x18] sm:$0xff]
  %42 = vset.pattern.permute.xlu0 0
  %43 = vperm.xlu0 %42, %v37
  %v44 = vpop.permute.xlu0 %43
  %47 = vset.pattern.permute.xlu0 0
  %48 = vperm.xlu0 %47, %v38
  %v49 = vpop.permute.xlu0 %48
  %52 = vset.pattern.permute.xlu0 0
  %53 = vperm.xlu0 %52, %v39
  %v54 = vpop.permute.xlu0 %53
  %57 = vset.pattern.permute.xlu0 0
  %58 = vperm.xlu0 %57, %v40
  %v59 = vpop.permute.xlu0 %58
  %vm61 = vcmask 31744
  %v63 = vsel %vm61, %v32, 0
  %v66 = vsel %vm61, %v33, 0
  %v69 = vsel %vm61, %v34, 0
  %v72 = vsel %vm61, %v35, 0
  %vm74 = vcmask 1043456
  %v76 = vsel %vm74, %v36, 0
  %78 = vmatprep.subr.mxu0 0.0
  %79 = vmatpush1.msra.mxu0 0.0
  %80 = vmatprep.subr.mxu0 0.0
  %81 = vmatpush1.msra.mxu0 0.0
  %82 = vmatprep.subr.mxu0 0.0
  %83 = vmatpush1.msra.mxu0 0.0
  %84 = vmatprep.subr.mxu0 0.0
  %85 = vmatpush1.msra.mxu0 0.0
  %86 = vmatprep.subr.mxu0 0.0
  %87 = vmatpush1.msra.mxu0 0.0
  %88 = vmatprep.subr.mxu0 0.0
  %89 = vmatpush1.msra.mxu0 0.0
  %90 = vmatprep.subr.mxu0 0.0
  %91 = vmatpush1.msra.mxu0 0.0
  %92 = vmatprep.subr.mxu0 0.0
  %93 = vmatpush1.msra.mxu0 0.0
  %94 = vmatprep.subr.mxu0 0.0
  %95 = vmatpush1.msra.mxu0 0.0
  %96 = vmatprep.subr.mxu0 0.0
  %97 = vmatpush1.msra.mxu0 0.0
  %98 = vmatprep.subr.mxu0 0.0
  %99 = vmatpush1.msra.mxu0 0.0
  %100 = vmatprep.subr.mxu0 0.0
  %101 = vmatpush1.msra.mxu0 0.0
  %102 = vmatprep.subr.mxu0 0.0
  %103 = vmatpush1.msra.mxu0 0.0
  %104 = vmatprep.subr.mxu0 0.0
  %105 = vmatpush1.msra.mxu0 0.0
  %106 = vmatprep.subr.mxu0 0.0
  %107 = vmatpush1.msra.mxu0 0.0
  %108 = vmatprep.subr.mxu0 0.0
  %v109 = vand.u32 %v76, 4294901760
  %110 = vmatpush1.msra.mxu0 %v109
  %111 = vmatprep.subr.mxu0 0.0
  %112 = vmatpush2.msra.mxu0 0.0
  %113 = vmatprep.subr.mxu0 0.0
  %114 = vmatpush2.msra.mxu0 0.0
  %115 = vmatprep.subr.mxu0 0.0
  %116 = vmatpush2.msra.mxu0 0.0
  %117 = vmatprep.subr.mxu0 0.0
  %118 = vmatpush2.msra.mxu0 0.0
  %119 = vmatprep.subr.mxu0 0.0
  %120 = vmatpush2.msra.mxu0 0.0
  %121 = vmatprep.subr.mxu0 0.0
  %122 = vmatpush2.msra.mxu0 0.0
  %123 = vmatprep.subr.mxu0 0.0
  %124 = vmatpush2.msra.mxu0 0.0
  %125 = vmatprep.subr.mxu0 0.0
  %126 = vmatpush2.msra.mxu0 0.0
  %127 = vmatprep.subr.mxu0 0.0
  %128 = vmatpush2.msra.mxu0 0.0
  %129 = vmatprep.subr.mxu0 0.0
  %130 = vmatpush2.msra.mxu0 0.0
  %131 = vmatprep.subr.mxu0 0.0
  %132 = vmatpush2.msra.mxu0 0.0
  %133 = vmatprep.subr.mxu0 0.0
  %134 = vmatpush2.msra.mxu0 0.0
  %135 = vmatprep.subr.mxu0 0.0
  %136 = vmatpush2.msra.mxu0 0.0
  %137 = vmatprep.subr.mxu0 0.0
  %138 = vmatpush2.msra.mxu0 0.0
  %139 = vmatprep.subr.mxu0 0.0
  %140 = vmatpush2.msra.mxu0 0.0
  %141 = vmatprep.subr.mxu0 0.0
  %142 = vmatpush2.msra.mxu0 0.0
  %143 = vmatprep.mubr.f32.mxu0 0.0
  %v144 = vand.u32 %v63, 4294901760
  %v145 = vsub.f32 %v63, %v144
  %v146 = vand.u32 %v145, 4294901760
  %v147 = vsub.f32 %v145, %v146
  %v148 = vand.u32 %v147, 4294901760
  %149 = vmatmul.mubr.f32.gmra.mxu0 %v148
  %v150 = vpop.f32.mrf.mxu0
  %v151 = vadd.f32 %v44, %v150
  %v152 = vpop.f32.mrf.mxu0
  %153 = vmatprep.mubr.f32.mxu0 0.0
  %v154 = vand.u32 %v66, 4294901760
  %v155 = vsub.f32 %v66, %v154
  %v156 = vand.u32 %v155, 4294901760
  %v157 = vsub.f32 %v155, %v156
  %v158 = vand.u32 %v157, 4294901760
  %159 = vmatmul.mubr.f32.gmra.mxu0 %v158
  %v160 = vpop.f32.mrf.mxu0
  %v161 = vadd.f32 %v49, %v160
  %v162 = vpop.f32.mrf.mxu0
  %163 = vmatprep.mubr.f32.mxu0 0.0
  %v164 = vand.u32 %v69, 4294901760
  %v165 = vsub.f32 %v69, %v164
  %v166 = vand.u32 %v165, 4294901760
  %v167 = vsub.f32 %v165, %v166
  %v168 = vand.u32 %v167, 4294901760
  %169 = vmatmul.mubr.f32.gmra.mxu0 %v168
  %v170 = vpop.f32.mrf.mxu0
  %v171 = vadd.f32 %v54, %v170
  %v172 = vpop.f32.mrf.mxu0
  %173 = vmatprep.mubr.f32.mxu0 0.0
  %v174 = vand.u32 %v72, 4294901760
  %v175 = vsub.f32 %v72, %v174
  %v176 = vand.u32 %v175, 4294901760
  %v177 = vsub.f32 %v175, %v176
  %v178 = vand.u32 %v177, 4294901760
  %179 = vmatmul.mubr.f32.gmra.mxu0 %v178
  %v180 = vpop.f32.mrf.mxu0
  %v181 = vadd.f32 %v59, %v180
  %v182 = vpop.f32.mrf.mxu0
  %183 = vdwg.mxu0
  %184 = vmatprep.subr.mxu0 0.0
  %185 = vmatpush1.msra.mxu0 0.0
  %186 = vmatprep.subr.mxu0 0.0
  %187 = vmatpush1.msra.mxu0 0.0
  %188 = vmatprep.subr.mxu0 0.0
  %189 = vmatpush1.msra.mxu0 0.0
  %190 = vmatprep.subr.mxu0 0.0
  %191 = vmatpush1.msra.mxu0 0.0
  %192 = vmatprep.subr.mxu0 0.0
  %193 = vmatpush1.msra.mxu0 0.0
  %194 = vmatprep.subr.mxu0 0.0
  %195 = vmatpush1.msra.mxu0 0.0
  %196 = vmatprep.subr.mxu0 0.0
  %197 = vmatpush1.msra.mxu0 0.0
  %198 = vmatprep.subr.mxu0 0.0
  %199 = vmatpush1.msra.mxu0 0.0
  %200 = vmatprep.subr.mxu0 0.0
  %201 = vmatpush1.msra.mxu0 0.0
  %202 = vmatprep.subr.mxu0 0.0
  %203 = vmatpush1.msra.mxu0 0.0
  %204 = vmatprep.subr.mxu0 0.0
  %205 = vmatpush1.msra.mxu0 0.0
  %206 = vmatprep.subr.mxu0 0.0
  %207 = vmatpush1.msra.mxu0 0.0
  %208 = vmatprep.subr.mxu0 0.0
  %209 = vmatpush1.msra.mxu0 0.0
  %210 = vmatprep.subr.mxu0 0.0
  %211 = vmatpush1.msra.mxu0 0.0
  %212 = vmatprep.subr.mxu0 0.0
  %213 = vmatpush1.msra.mxu0 0.0
  %214 = vmatprep.subr.mxu0 0.0
  %v215 = vand.u32 %v76, 4294901760
  %v216 = vsub.f32 %v76, %v215
  %v217 = vand.u32 %v216, 4294901760
  %v218 = vsub.f32 %v216, %v217
  %v219 = vand.u32 %v218, 4294901760
  %220 = vmatpush1.msra.mxu0 %v219
  %221 = vmatprep.subr.mxu0 0.0
  %222 = vmatpush2.msra.mxu0 0.0
  %223 = vmatprep.subr.mxu0 0.0
  %224 = vmatpush2.msra.mxu0 0.0
  %225 = vmatprep.subr.mxu0 0.0
  %226 = vmatpush2.msra.mxu0 0.0
  %227 = vmatprep.subr.mxu0 0.0
  %228 = vmatpush2.msra.mxu0 0.0
  %229 = vmatprep.subr.mxu0 0.0
  %230 = vmatpush2.msra.mxu0 0.0
  %231 = vmatprep.subr.mxu0 0.0
  %232 = vmatpush2.msra.mxu0 0.0
  %233 = vmatprep.subr.mxu0 0.0
  %234 = vmatpush2.msra.mxu0 0.0
  %235 = vmatprep.subr.mxu0 0.0
  %236 = vmatpush2.msra.mxu0 0.0
  %237 = vmatprep.subr.mxu0 0.0
  %238 = vmatpush2.msra.mxu0 0.0
  %239 = vmatprep.subr.mxu0 0.0
  %240 = vmatpush2.msra.mxu0 0.0
  %241 = vmatprep.subr.mxu0 0.0
  %242 = vmatpush2.msra.mxu0 0.0
  %243 = vmatprep.subr.mxu0 0.0
  %244 = vmatpush2.msra.mxu0 0.0
  %245 = vmatprep.subr.mxu0 0.0
  %246 = vmatpush2.msra.mxu0 0.0
  %247 = vmatprep.subr.mxu0 0.0
  %248 = vmatpush2.msra.mxu0 0.0
  %249 = vmatprep.subr.mxu0 0.0
  %250 = vmatpush2.msra.mxu0 0.0
  %251 = vmatprep.subr.mxu0 0.0
  %252 = vmatpush2.msra.mxu0 0.0
  %253 = vmatprep.mubr.f32.mxu0 0.0
  %v254 = vand.u32 %v63, 4294901760
  %255 = vmatmul.mubr.f32.gmra.mxu0 %v254
  %v256 = vpop.f32.mrf.mxu0
  %v257 = vadd.f32 %v151, %v256
  %v258 = vpop.f32.mrf.mxu0
  %259 = vmatprep.mubr.f32.mxu0 0.0
  %v260 = vand.u32 %v66, 4294901760
  %261 = vmatmul.mubr.f32.gmra.mxu0 %v260
  %v262 = vpop.f32.mrf.mxu0
  %v263 = vadd.f32 %v161, %v262
  %v264 = vpop.f32.mrf.mxu0
  %265 = vmatprep.mubr.f32.mxu0 0.0
  %v266 = vand.u32 %v69, 4294901760
  %267 = vmatmul.mubr.f32.gmra.mxu0 %v266
  %v268 = vpop.f32.mrf.mxu0
  %v269 = vadd.f32 %v171, %v268
  %v270 = vpop.f32.mrf.mxu0
  %271 = vmatprep.mubr.f32.mxu0 0.0
  %v272 = vand.u32 %v72, 4294901760
  %273 = vmatmul.mubr.f32.gmra.mxu0 %v272
  %v274 = vpop.f32.mrf.mxu0
  %v275 = vadd.f32 %v181, %v274
  %v276 = vpop.f32.mrf.mxu0
  %277 = vdwg.mxu0
  %278 = vmatprep.subr.mxu0 0.0
  %279 = vmatpush1.msra.mxu0 0.0
  %280 = vmatprep.subr.mxu0 0.0
  %281 = vmatpush1.msra.mxu0 0.0
  %282 = vmatprep.subr.mxu0 0.0
  %283 = vmatpush1.msra.mxu0 0.0
  %284 = vmatprep.subr.mxu0 0.0
  %285 = vmatpush1.msra.mxu0 0.0
  %286 = vmatprep.subr.mxu0 0.0
  %287 = vmatpush1.msra.mxu0 0.0
  %288 = vmatprep.subr.mxu0 0.0
  %289 = vmatpush1.msra.mxu0 0.0
  %290 = vmatprep.subr.mxu0 0.0
  %291 = vmatpush1.msra.mxu0 0.0
  %292 = vmatprep.subr.mxu0 0.0
  %293 = vmatpush1.msra.mxu0 0.0
  %294 = vmatprep.subr.mxu0 0.0
  %295 = vmatpush1.msra.mxu0 0.0
  %296 = vmatprep.subr.mxu0 0.0
  %297 = vmatpush1.msra.mxu0 0.0
  %298 = vmatprep.subr.mxu0 0.0
  %299 = vmatpush1.msra.mxu0 0.0
  %300 = vmatprep.subr.mxu0 0.0
  %301 = vmatpush1.msra.mxu0 0.0
  %302 = vmatprep.subr.mxu0 0.0
  %303 = vmatpush1.msra.mxu0 0.0
  %304 = vmatprep.subr.mxu0 0.0
  %305 = vmatpush1.msra.mxu0 0.0
  %306 = vmatprep.subr.mxu0 0.0
  %307 = vmatpush1.msra.mxu0 0.0
  %308 = vmatprep.subr.mxu0 0.0
  %v309 = vand.u32 %v76, 4294901760
  %v310 = vsub.f32 %v76, %v309
  %311 = vmatpush1.msra.mxu0 %v310
  %312 = vmatprep.subr.mxu0 0.0
  %313 = vmatpush2.msra.mxu0 0.0
  %314 = vmatprep.subr.mxu0 0.0
  %315 = vmatpush2.msra.mxu0 0.0
  %316 = vmatprep.subr.mxu0 0.0
  %317 = vmatpush2.msra.mxu0 0.0
  %318 = vmatprep.subr.mxu0 0.0
  %319 = vmatpush2.msra.mxu0 0.0
  %320 = vmatprep.subr.mxu0 0.0
  %321 = vmatpush2.msra.mxu0 0.0
  %322 = vmatprep.subr.mxu0 0.0
  %323 = vmatpush2.msra.mxu0 0.0
  %324 = vmatprep.subr.mxu0 0.0
  %325 = vmatpush2.msra.mxu0 0.0
  %326 = vmatprep.subr.mxu0 0.0
  %327 = vmatpush2.msra.mxu0 0.0
  %328 = vmatprep.subr.mxu0 0.0
  %329 = vmatpush2.msra.mxu0 0.0
  %330 = vmatprep.subr.mxu0 0.0
  %331 = vmatpush2.msra.mxu0 0.0
  %332 = vmatprep.subr.mxu0 0.0
  %333 = vmatpush2.msra.mxu0 0.0
  %334 = vmatprep.subr.mxu0 0.0
  %335 = vmatpush2.msra.mxu0 0.0
  %336 = vmatprep.subr.mxu0 0.0
  %337 = vmatpush2.msra.mxu0 0.0
  %338 = vmatprep.subr.mxu0 0.0
  %339 = vmatpush2.msra.mxu0 0.0
  %340 = vmatprep.subr.mxu0 0.0
  %341 = vmatpush2.msra.mxu0 0.0
  %342 = vmatprep.subr.mxu0 0.0
  %343 = vmatpush2.msra.mxu0 0.0
  %344 = vmatprep.mubr.f32.mxu0 0.0
  %v345 = vand.u32 %v63, 4294901760
  %v346 = vsub.f32 %v63, %v345
  %347 = vmatmul.mubr.f32.gmra.mxu0 %v346
  %v348 = vpop.f32.mrf.mxu0
  %v349 = vadd.f32 %v257, %v348
  %v350 = vpop.f32.mrf.mxu0
  %351 = vmatprep.mubr.f32.mxu0 0.0
  %v352 = vand.u32 %v66, 4294901760
  %v353 = vsub.f32 %v66, %v352
  %354 = vmatmul.mubr.f32.gmra.mxu0 %v353
  %v355 = vpop.f32.mrf.mxu0
  %v356 = vadd.f32 %v263, %v355
  %v357 = vpop.f32.mrf.mxu0
  %358 = vmatprep.mubr.f32.mxu0 0.0
  %v359 = vand.u32 %v69, 4294901760
  %v360 = vsub.f32 %v69, %v359
  %361 = vmatmul.mubr.f32.gmra.mxu0 %v360
  %v362 = vpop.f32.mrf.mxu0
  %v363 = vadd.f32 %v269, %v362
  %v364 = vpop.f32.mrf.mxu0
  %365 = vmatprep.mubr.f32.mxu0 0.0
  %v366 = vand.u32 %v72, 4294901760
  %v367 = vsub.f32 %v72, %v366
  %368 = vmatmul.mubr.f32.gmra.mxu0 %v367
  %v369 = vpop.f32.mrf.mxu0
  %v370 = vadd.f32 %v275, %v369
  %v371 = vpop.f32.mrf.mxu0
  %372 = vdwg.mxu0
  %373 = vmatprep.subr.mxu0 0.0
  %374 = vmatpush1.msra.mxu0 0.0
  %375 = vmatprep.subr.mxu0 0.0
  %376 = vmatpush1.msra.mxu0 0.0
  %377 = vmatprep.subr.mxu0 0.0
  %378 = vmatpush1.msra.mxu0 0.0
  %379 = vmatprep.subr.mxu0 0.0
  %380 = vmatpush1.msra.mxu0 0.0
  %381 = vmatprep.subr.mxu0 0.0
  %382 = vmatpush1.msra.mxu0 0.0
  %383 = vmatprep.subr.mxu0 0.0
  %384 = vmatpush1.msra.mxu0 0.0
  %385 = vmatprep.subr.mxu0 0.0
  %386 = vmatpush1.msra.mxu0 0.0
  %387 = vmatprep.subr.mxu0 0.0
  %388 = vmatpush1.msra.mxu0 0.0
  %389 = vmatprep.subr.mxu0 0.0
  %390 = vmatpush1.msra.mxu0 0.0
  %391 = vmatprep.subr.mxu0 0.0
  %392 = vmatpush1.msra.mxu0 0.0
  %393 = vmatprep.subr.mxu0 0.0
  %394 = vmatpush1.msra.mxu0 0.0
  %395 = vmatprep.subr.mxu0 0.0
  %396 = vmatpush1.msra.mxu0 0.0
  %397 = vmatprep.subr.mxu0 0.0
  %398 = vmatpush1.msra.mxu0 0.0
  %399 = vmatprep.subr.mxu0 0.0
  %400 = vmatpush1.msra.mxu0 0.0
  %401 = vmatprep.subr.mxu0 0.0
  %402 = vmatpush1.msra.mxu0 0.0
  %403 = vmatprep.subr.mxu0 0.0
  %v404 = vand.u32 %v76, 4294901760
  %405 = vmatpush1.msra.mxu0 %v404
  %406 = vmatprep.subr.mxu0 0.0
  %407 = vmatpush2.msra.mxu0 0.0
  %408 = vmatprep.subr.mxu0 0.0
  %409 = vmatpush2.msra.mxu0 0.0
  %410 = vmatprep.subr.mxu0 0.0
  %411 = vmatpush2.msra.mxu0 0.0
  %412 = vmatprep.subr.mxu0 0.0
  %413 = vmatpush2.msra.mxu0 0.0
  %414 = vmatprep.subr.mxu0 0.0
  %415 = vmatpush2.msra.mxu0 0.0
  %416 = vmatprep.subr.mxu0 0.0
  %417 = vmatpush2.msra.mxu0 0.0
  %418 = vmatprep.subr.mxu0 0.0
  %419 = vmatpush2.msra.mxu0 0.0
  %420 = vmatprep.subr.mxu0 0.0
  %421 = vmatpush2.msra.mxu0 0.0
  %422 = vmatprep.subr.mxu0 0.0
  %423 = vmatpush2.msra.mxu0 0.0
  %424 = vmatprep.subr.mxu0 0.0
  %425 = vmatpush2.msra.mxu0 0.0
  %426 = vmatprep.subr.mxu0 0.0
  %427 = vmatpush2.msra.mxu0 0.0
  %428 = vmatprep.subr.mxu0 0.0
  %429 = vmatpush2.msra.mxu0 0.0
  %430 = vmatprep.subr.mxu0 0.0
  %431 = vmatpush2.msra.mxu0 0.0
  %432 = vmatprep.subr.mxu0 0.0
  %433 = vmatpush2.msra.mxu0 0.0
  %434 = vmatprep.subr.mxu0 0.0
  %435 = vmatpush2.msra.mxu0 0.0
  %436 = vmatprep.subr.mxu0 0.0
  %437 = vmatpush2.msra.mxu0 0.0
  %438 = vmatprep.mubr.f32.mxu0 0.0
  %v439 = vand.u32 %v63, 4294901760
  %v440 = vsub.f32 %v63, %v439
  %v441 = vand.u32 %v440, 4294901760
  %442 = vmatmul.mubr.f32.gmra.mxu0 %v441
  %v443 = vpop.f32.mrf.mxu0
  %v444 = vadd.f32 %v349, %v443
  %v445 = vpop.f32.mrf.mxu0
  %446 = vmatprep.mubr.f32.mxu0 0.0
  %v447 = vand.u32 %v66, 4294901760
  %v448 = vsub.f32 %v66, %v447
  %v449 = vand.u32 %v448, 4294901760
  %450 = vmatmul.mubr.f32.gmra.mxu0 %v449
  %v451 = vpop.f32.mrf.mxu0
  %v452 = vadd.f32 %v356, %v451
  %v453 = vpop.f32.mrf.mxu0
  %454 = vmatprep.mubr.f32.mxu0 0.0
  %v455 = vand.u32 %v69, 4294901760
  %v456 = vsub.f32 %v69, %v455
  %v457 = vand.u32 %v456, 4294901760
  %458 = vmatmul.mubr.f32.gmra.mxu0 %v457
  %v459 = vpop.f32.mrf.mxu0
  %v460 = vadd.f32 %v363, %v459
  %v461 = vpop.f32.mrf.mxu0
  %462 = vmatprep.mubr.f32.mxu0 0.0
  %v463 = vand.u32 %v72, 4294901760
  %v464 = vsub.f32 %v72, %v463
  %v465 = vand.u32 %v464, 4294901760
  %466 = vmatmul.mubr.f32.gmra.mxu0 %v465
  %v467 = vpop.f32.mrf.mxu0
  %v468 = vadd.f32 %v370, %v467
  %v469 = vpop.f32.mrf.mxu0
  %470 = vdwg.mxu0
  %471 = vmatprep.subr.mxu0 0.0
  %472 = vmatpush1.msra.mxu0 0.0
  %473 = vmatprep.subr.mxu0 0.0
  %474 = vmatpush1.msra.mxu0 0.0
  %475 = vmatprep.subr.mxu0 0.0
  %476 = vmatpush1.msra.mxu0 0.0
  %477 = vmatprep.subr.mxu0 0.0
  %478 = vmatpush1.msra.mxu0 0.0
  %479 = vmatprep.subr.mxu0 0.0
  %480 = vmatpush1.msra.mxu0 0.0
  %481 = vmatprep.subr.mxu0 0.0
  %482 = vmatpush1.msra.mxu0 0.0
  %483 = vmatprep.subr.mxu0 0.0
  %484 = vmatpush1.msra.mxu0 0.0
  %485 = vmatprep.subr.mxu0 0.0
  %486 = vmatpush1.msra.mxu0 0.0
  %487 = vmatprep.subr.mxu0 0.0
  %488 = vmatpush1.msra.mxu0 0.0
  %489 = vmatprep.subr.mxu0 0.0
  %490 = vmatpush1.msra.mxu0 0.0
  %491 = vmatprep.subr.mxu0 0.0
  %492 = vmatpush1.msra.mxu0 0.0
  %493 = vmatprep.subr.mxu0 0.0
  %494 = vmatpush1.msra.mxu0 0.0
  %495 = vmatprep.subr.mxu0 0.0
  %496 = vmatpush1.msra.mxu0 0.0
  %497 = vmatprep.subr.mxu0 0.0
  %498 = vmatpush1.msra.mxu0 0.0
  %499 = vmatprep.subr.mxu0 0.0
  %500 = vmatpush1.msra.mxu0 0.0
  %501 = vmatprep.subr.mxu0 0.0
  %v502 = vand.u32 %v76, 4294901760
  %v503 = vsub.f32 %v76, %v502
  %v504 = vand.u32 %v503, 4294901760
  %505 = vmatpush1.msra.mxu0 %v504
  %506 = vmatprep.subr.mxu0 0.0
  %507 = vmatpush2.msra.mxu0 0.0
  %508 = vmatprep.subr.mxu0 0.0
  %509 = vmatpush2.msra.mxu0 0.0
  %510 = vmatprep.subr.mxu0 0.0
  %511 = vmatpush2.msra.mxu0 0.0
  %512 = vmatprep.subr.mxu0 0.0
  %513 = vmatpush2.msra.mxu0 0.0
  %514 = vmatprep.subr.mxu0 0.0
  %515 = vmatpush2.msra.mxu0 0.0
  %516 = vmatprep.subr.mxu0 0.0
  %517 = vmatpush2.msra.mxu0 0.0
  %518 = vmatprep.subr.mxu0 0.0
  %519 = vmatpush2.msra.mxu0 0.0
  %520 = vmatprep.subr.mxu0 0.0
  %521 = vmatpush2.msra.mxu0 0.0
  %522 = vmatprep.subr.mxu0 0.0
  %523 = vmatpush2.msra.mxu0 0.0
  %524 = vmatprep.subr.mxu0 0.0
  %525 = vmatpush2.msra.mxu0 0.0
  %526 = vmatprep.subr.mxu0 0.0
  %527 = vmatpush2.msra.mxu0 0.0
  %528 = vmatprep.subr.mxu0 0.0
  %529 = vmatpush2.msra.mxu0 0.0
  %530 = vmatprep.subr.mxu0 0.0
  %531 = vmatpush2.msra.mxu0 0.0
  %532 = vmatprep.subr.mxu0 0.0
  %533 = vmatpush2.msra.mxu0 0.0
  %534 = vmatprep.subr.mxu0 0.0
  %535 = vmatpush2.msra.mxu0 0.0
  %536 = vmatprep.subr.mxu0 0.0
  %537 = vmatpush2.msra.mxu0 0.0
  %538 = vmatprep.mubr.f32.mxu0 0.0
  %v539 = vand.u32 %v63, 4294901760
  %540 = vmatmul.mubr.f32.gmra.mxu0 %v539
  %v541 = vpop.f32.mrf.mxu0
  %v542 = vadd.f32 %v444, %v541
  %v543 = vpop.f32.mrf.mxu0
  %544 = vmatprep.mubr.f32.mxu0 0.0
  %v545 = vand.u32 %v66, 4294901760
  %546 = vmatmul.mubr.f32.gmra.mxu0 %v545
  %v547 = vpop.f32.mrf.mxu0
  %v548 = vadd.f32 %v452, %v547
  %v549 = vpop.f32.mrf.mxu0
  %550 = vmatprep.mubr.f32.mxu0 0.0
  %v551 = vand.u32 %v69, 4294901760
  %552 = vmatmul.mubr.f32.gmra.mxu0 %v551
  %v553 = vpop.f32.mrf.mxu0
  %v554 = vadd.f32 %v460, %v553
  %v555 = vpop.f32.mrf.mxu0
  %556 = vmatprep.mubr.f32.mxu0 0.0
  %v557 = vand.u32 %v72, 4294901760
  %558 = vmatmul.mubr.f32.gmra.mxu0 %v557
  %v559 = vpop.f32.mrf.mxu0
  %v560 = vadd.f32 %v468, %v559
  %v561 = vpop.f32.mrf.mxu0
  %562 = vdwg.mxu0
  %563 = vmatprep.subr.mxu0 0.0
  %564 = vmatpush1.msra.mxu0 0.0
  %565 = vmatprep.subr.mxu0 0.0
  %566 = vmatpush1.msra.mxu0 0.0
  %567 = vmatprep.subr.mxu0 0.0
  %568 = vmatpush1.msra.mxu0 0.0
  %569 = vmatprep.subr.mxu0 0.0
  %570 = vmatpush1.msra.mxu0 0.0
  %571 = vmatprep.subr.mxu0 0.0
  %572 = vmatpush1.msra.mxu0 0.0
  %573 = vmatprep.subr.mxu0 0.0
  %574 = vmatpush1.msra.mxu0 0.0
  %575 = vmatprep.subr.mxu0 0.0
  %576 = vmatpush1.msra.mxu0 0.0
  %577 = vmatprep.subr.mxu0 0.0
  %578 = vmatpush1.msra.mxu0 0.0
  %579 = vmatprep.subr.mxu0 0.0
  %580 = vmatpush1.msra.mxu0 0.0
  %581 = vmatprep.subr.mxu0 0.0
  %582 = vmatpush1.msra.mxu0 0.0
  %583 = vmatprep.subr.mxu0 0.0
  %584 = vmatpush1.msra.mxu0 0.0
  %585 = vmatprep.subr.mxu0 0.0
  %586 = vmatpush1.msra.mxu0 0.0
  %587 = vmatprep.subr.mxu0 0.0
  %588 = vmatpush1.msra.mxu0 0.0
  %589 = vmatprep.subr.mxu0 0.0
  %590 = vmatpush1.msra.mxu0 0.0
  %591 = vmatprep.subr.mxu0 0.0
  %592 = vmatpush1.msra.mxu0 0.0
  %593 = vmatprep.subr.mxu0 0.0
  %v594 = vand.u32 %v76, 4294901760
  %595 = vmatpush1.msra.mxu0 %v594
  %596 = vmatprep.subr.mxu0 0.0
  %597 = vmatpush2.msra.mxu0 0.0
  %598 = vmatprep.subr.mxu0 0.0
  %599 = vmatpush2.msra.mxu0 0.0
  %600 = vmatprep.subr.mxu0 0.0
  %601 = vmatpush2.msra.mxu0 0.0
  %602 = vmatprep.subr.mxu0 0.0
  %603 = vmatpush2.msra.mxu0 0.0
  %604 = vmatprep.subr.mxu0 0.0
  %605 = vmatpush2.msra.mxu0 0.0
  %606 = vmatprep.subr.mxu0 0.0
  %607 = vmatpush2.msra.mxu0 0.0
  %608 = vmatprep.subr.mxu0 0.0
  %609 = vmatpush2.msra.mxu0 0.0
  %610 = vmatprep.subr.mxu0 0.0
  %611 = vmatpush2.msra.mxu0 0.0
  %612 = vmatprep.subr.mxu0 0.0
  %613 = vmatpush2.msra.mxu0 0.0
  %614 = vmatprep.subr.mxu0 0.0
  %615 = vmatpush2.msra.mxu0 0.0
  %616 = vmatprep.subr.mxu0 0.0
  %617 = vmatpush2.msra.mxu0 0.0
  %618 = vmatprep.subr.mxu0 0.0
  %619 = vmatpush2.msra.mxu0 0.0
  %620 = vmatprep.subr.mxu0 0.0
  %621 = vmatpush2.msra.mxu0 0.0
  %622 = vmatprep.subr.mxu0 0.0
  %623 = vmatpush2.msra.mxu0 0.0
  %624 = vmatprep.subr.mxu0 0.0
  %625 = vmatpush2.msra.mxu0 0.0
  %626 = vmatprep.subr.mxu0 0.0
  %627 = vmatpush2.msra.mxu0 0.0
  %628 = vmatprep.mubr.f32.mxu0 0.0
  %v629 = vand.u32 %v63, 4294901760
  %630 = vmatmul.mubr.f32.gmra.mxu0 %v629
  %v631 = vpop.f32.mrf.mxu0
  %v632 = vadd.f32 %v542, %v631
  %v633 = vpop.f32.mrf.mxu0
  %634 = vmatprep.mubr.f32.mxu0 0.0
  %v635 = vand.u32 %v66, 4294901760
  %636 = vmatmul.mubr.f32.gmra.mxu0 %v635
  %v637 = vpop.f32.mrf.mxu0
  %v638 = vadd.f32 %v548, %v637
  %v639 = vpop.f32.mrf.mxu0
  %640 = vmatprep.mubr.f32.mxu0 0.0
  %v641 = vand.u32 %v69, 4294901760
  %642 = vmatmul.mubr.f32.gmra.mxu0 %v641
  %v643 = vpop.f32.mrf.mxu0
  %v644 = vadd.f32 %v554, %v643
  %v645 = vpop.f32.mrf.mxu0
  %646 = vmatprep.mubr.f32.mxu0 0.0
  %v647 = vand.u32 %v72, 4294901760
  %648 = vmatmul.mubr.f32.gmra.mxu0 %v647
  %v649 = vpop.f32.mrf.mxu0
  %v650 = vadd.f32 %v560, %v649
  %v651 = vpop.f32.mrf.mxu0
  %652 = vdwg.mxu0
  %v653 = vtanh.pop %v632
  %v654 = vtanh.pop %v638
  %v655 = vtanh.pop %v644
  %v656 = vtanh.pop %v650
  %v657 = vld [vmem:[%s3] sm:$0xff]
  %v658 = vld [vmem:[%s3 + $0x8] sm:$0xff]
  %v659 = vld [vmem:[%s3 + $0x10] sm:$0xff]
  %v660 = vld [vmem:[%s3 + $0x18] sm:$0xff]
  %v661 = vld [vmem:[%s4] sm:$0xff]
  %v662 = vld [vmem:[%s4 + $0x8] sm:$0xff]
  %v663 = vld [vmem:[%s4 + $0x10] sm:$0xff]
  %v664 = vld [vmem:[%s4 + $0x18] sm:$0xff]
  %666 = vset.pattern.permute.xlu0 0
  %667 = vperm.xlu0 %666, %v661
  %v668 = vpop.permute.xlu0 %667
  %671 = vset.pattern.permute.xlu0 0
  %672 = vperm.xlu0 %671, %v662
  %v673 = vpop.permute.xlu0 %672
  %676 = vset.pattern.permute.xlu0 0
  %677 = vperm.xlu0 %676, %v663
  %v678 = vpop.permute.xlu0 %677
  %681 = vset.pattern.permute.xlu0 0
  %682 = vperm.xlu0 %681, %v664
  %v683 = vpop.permute.xlu0 %682
  %vm685 = vcmask 261120
  %v687 = vsel %vm685, %v657, 0
  %v690 = vsel %vm685, %v658, 0
  %v693 = vsel %vm685, %v659, 0
  %v696 = vsel %vm685, %v660, 0
  %698 = vmatprep.subr.mxu0 0.0
  %699 = vmatpush1.msra.mxu0 0.0
  %700 = vmatprep.subr.mxu0 0.0
  %701 = vmatpush1.msra.mxu0 0.0
  %702 = vmatprep.subr.mxu0 0.0
  %703 = vmatpush1.msra.mxu0 0.0
  %704 = vmatprep.subr.mxu0 0.0
  %705 = vmatpush1.msra.mxu0 0.0
  %706 = vmatprep.subr.mxu0 0.0
  %707 = vmatpush1.msra.mxu0 0.0
  %708 = vmatprep.subr.mxu0 0.0
  %709 = vmatpush1.msra.mxu0 0.0
  %710 = vmatprep.subr.mxu0 0.0
  %711 = vmatpush1.msra.mxu0 0.0
  %712 = vmatprep.subr.mxu0 0.0
  %713 = vmatpush1.msra.mxu0 0.0
  %714 = vmatprep.subr.mxu0 0.0
  %715 = vmatpush1.msra.mxu0 0.0
  %716 = vmatprep.subr.mxu0 0.0
  %717 = vmatpush1.msra.mxu0 0.0
  %718 = vmatprep.subr.mxu0 0.0
  %719 = vmatpush1.msra.mxu0 0.0
  %720 = vmatprep.subr.mxu0 0.0
  %721 = vmatpush1.msra.mxu0 0.0
  %722 = vmatprep.subr.mxu0 0.0
  %v723 = vand.u32 %v656, 4294901760
  %724 = vmatpush1.msra.mxu0 %v723
  %725 = vmatprep.subr.mxu0 0.0
  %v726 = vand.u32 %v655, 4294901760
  %727 = vmatpush1.msra.mxu0 %v726
  %728 = vmatprep.subr.mxu0 0.0
  %v729 = vand.u32 %v654, 4294901760
  %730 = vmatpush1.msra.mxu0 %v729
  %731 = vmatprep.subr.mxu0 0.0
  %v732 = vand.u32 %v653, 4294901760
  %733 = vmatpush1.msra.mxu0 %v732
  %734 = vmatprep.subr.mxu0 0.0
  %735 = vmatpush2.msra.mxu0 0.0
  %736 = vmatprep.subr.mxu0 0.0
  %737 = vmatpush2.msra.mxu0 0.0
  %738 = vmatprep.subr.mxu0 0.0
  %739 = vmatpush2.msra.mxu0 0.0
  %740 = vmatprep.subr.mxu0 0.0
  %741 = vmatpush2.msra.mxu0 0.0
  %742 = vmatprep.subr.mxu0 0.0
  %743 = vmatpush2.msra.mxu0 0.0
  %744 = vmatprep.subr.mxu0 0.0
  %745 = vmatpush2.msra.mxu0 0.0
  %746 = vmatprep.subr.mxu0 0.0
  %747 = vmatpush2.msra.mxu0 0.0
  %748 = vmatprep.subr.mxu0 0.0
  %749 = vmatpush2.msra.mxu0 0.0
  %750 = vmatprep.subr.mxu0 0.0
  %751 = vmatpush2.msra.mxu0 0.0
  %752 = vmatprep.subr.mxu0 0.0
  %753 = vmatpush2.msra.mxu0 0.0
  %754 = vmatprep.subr.mxu0 0.0
  %755 = vmatpush2.msra.mxu0 0.0
  %756 = vmatprep.subr.mxu0 0.0
  %757 = vmatpush2.msra.mxu0 0.0
  %758 = vmatprep.subr.mxu0 0.0
  %759 = vmatpush2.msra.mxu0 0.0
  %760 = vmatprep.subr.mxu0 0.0
  %761 = vmatpush2.msra.mxu0 0.0
  %762 = vmatprep.subr.mxu0 0.0
  %763 = vmatpush2.msra.mxu0 0.0
  %764 = vmatprep.subr.mxu0 0.0
  %765 = vmatpush2.msra.mxu0 0.0
  %766 = vmatprep.mubr.f32.mxu0 0.0
  %v767 = vand.u32 %v687, 4294901760
  %v768 = vsub.f32 %v687, %v767
  %v769 = vand.u32 %v768, 4294901760
  %v770 = vsub.f32 %v768, %v769
  %v771 = vand.u32 %v770, 4294901760
  %772 = vmatmul.mubr.f32.gmra.mxu0 %v771
  %v773 = vpop.f32.mrf.mxu0
  %v774 = vadd.f32 %v668, %v773
  %v775 = vpop.f32.mrf.mxu0
  %776 = vmatprep.mubr.f32.mxu0 0.0
  %v777 = vand.u32 %v690, 4294901760
  %v778 = vsub.f32 %v690, %v777
  %v779 = vand.u32 %v778, 4294901760
  %v780 = vsub.f32 %v778, %v779
  %v781 = vand.u32 %v780, 4294901760
  %782 = vmatmul.mubr.f32.gmra.mxu0 %v781
  %v783 = vpop.f32.mrf.mxu0
  %v784 = vadd.f32 %v673, %v783
  %v785 = vpop.f32.mrf.mxu0
  %786 = vmatprep.mubr.f32.mxu0 0.0
  %v787 = vand.u32 %v693, 4294901760
  %v788 = vsub.f32 %v693, %v787
  %v789 = vand.u32 %v788, 4294901760
  %v790 = vsub.f32 %v788, %v789
  %v791 = vand.u32 %v790, 4294901760
  %792 = vmatmul.mubr.f32.gmra.mxu0 %v791
  %v793 = vpop.f32.mrf.mxu0
  %v794 = vadd.f32 %v678, %v793
  %v795 = vpop.f32.mrf.mxu0
  %796 = vmatprep.mubr.f32.mxu0 0.0
  %v797 = vand.u32 %v696, 4294901760
  %v798 = vsub.f32 %v696, %v797
  %v799 = vand.u32 %v798, 4294901760
  %v800 = vsub.f32 %v798, %v799
  %v801 = vand.u32 %v800, 4294901760
  %802 = vmatmul.mubr.f32.gmra.mxu0 %v801
  %v803 = vpop.f32.mrf.mxu0
  %v804 = vadd.f32 %v683, %v803
  %v805 = vpop.f32.mrf.mxu0
  %806 = vdwg.mxu0
  %807 = vmatprep.subr.mxu0 0.0
  %808 = vmatpush1.msra.mxu0 0.0
  %809 = vmatprep.subr.mxu0 0.0
  %810 = vmatpush1.msra.mxu0 0.0
  %811 = vmatprep.subr.mxu0 0.0
  %812 = vmatpush1.msra.mxu0 0.0
  %813 = vmatprep.subr.mxu0 0.0
  %814 = vmatpush1.msra.mxu0 0.0
  %815 = vmatprep.subr.mxu0 0.0
  %816 = vmatpush1.msra.mxu0 0.0
  %817 = vmatprep.subr.mxu0 0.0
  %818 = vmatpush1.msra.mxu0 0.0
  %819 = vmatprep.subr.mxu0 0.0
  %820 = vmatpush1.msra.mxu0 0.0
  %821 = vmatprep.subr.mxu0 0.0
  %822 = vmatpush1.msra.mxu0 0.0
  %823 = vmatprep.subr.mxu0 0.0
  %824 = vmatpush1.msra.mxu0 0.0
  %825 = vmatprep.subr.mxu0 0.0
  %826 = vmatpush1.msra.mxu0 0.0
  %827 = vmatprep.subr.mxu0 0.0
  %828 = vmatpush1.msra.mxu0 0.0
  %829 = vmatprep.subr.mxu0 0.0
  %830 = vmatpush1.msra.mxu0 0.0
  %831 = vmatprep.subr.mxu0 0.0
  %v832 = vand.u32 %v656, 4294901760
  %v833 = vsub.f32 %v656, %v832
  %v834 = vand.u32 %v833, 4294901760
  %v835 = vsub.f32 %v833, %v834
  %v836 = vand.u32 %v835, 4294901760
  %837 = vmatpush1.msra.mxu0 %v836
  %838 = vmatprep.subr.mxu0 0.0
  %v839 = vand.u32 %v655, 4294901760
  %v840 = vsub.f32 %v655, %v839
  %v841 = vand.u32 %v840, 4294901760
  %v842 = vsub.f32 %v840, %v841
  %v843 = vand.u32 %v842, 4294901760
  %844 = vmatpush1.msra.mxu0 %v843
  %845 = vmatprep.subr.mxu0 0.0
  %v846 = vand.u32 %v654, 4294901760
  %v847 = vsub.f32 %v654, %v846
  %v848 = vand.u32 %v847, 4294901760
  %v849 = vsub.f32 %v847, %v848
  %v850 = vand.u32 %v849, 4294901760
  %851 = vmatpush1.msra.mxu0 %v850
  %852 = vmatprep.subr.mxu0 0.0
  %v853 = vand.u32 %v653, 4294901760
  %v854 = vsub.f32 %v653, %v853
  %v855 = vand.u32 %v854, 4294901760
  %v856 = vsub.f32 %v854, %v855
  %v857 = vand.u32 %v856, 4294901760
  %858 = vmatpush1.msra.mxu0 %v857
  %859 = vmatprep.subr.mxu0 0.0
  %860 = vmatpush2.msra.mxu0 0.0
  %861 = vmatprep.subr.mxu0 0.0
  %862 = vmatpush2.msra.mxu0 0.0
  %863 = vmatprep.subr.mxu0 0.0
  %864 = vmatpush2.msra.mxu0 0.0
  %865 = vmatprep.subr.mxu0 0.0
  %866 = vmatpush2.msra.mxu0 0.0
  %867 = vmatprep.subr.mxu0 0.0
  %868 = vmatpush2.msra.mxu0 0.0
  %869 = vmatprep.subr.mxu0 0.0
  %870 = vmatpush2.msra.mxu0 0.0
  %871 = vmatprep.subr.mxu0 0.0
  %872 = vmatpush2.msra.mxu0 0.0
  %873 = vmatprep.subr.mxu0 0.0
  %874 = vmatpush2.msra.mxu0 0.0
  %875 = vmatprep.subr.mxu0 0.0
  %876 = vmatpush2.msra.mxu0 0.0
  %877 = vmatprep.subr.mxu0 0.0
  %878 = vmatpush2.msra.mxu0 0.0
  %879 = vmatprep.subr.mxu0 0.0
  %880 = vmatpush2.msra.mxu0 0.0
  %881 = vmatprep.subr.mxu0 0.0
  %882 = vmatpush2.msra.mxu0 0.0
  %883 = vmatprep.subr.mxu0 0.0
  %884 = vmatpush2.msra.mxu0 0.0
  %885 = vmatprep.subr.mxu0 0.0
  %886 = vmatpush2.msra.mxu0 0.0
  %887 = vmatprep.subr.mxu0 0.0
  %888 = vmatpush2.msra.mxu0 0.0
  %889 = vmatprep.subr.mxu0 0.0
  %890 = vmatpush2.msra.mxu0 0.0
  %891 = vmatprep.mubr.f32.mxu0 0.0
  %v892 = vand.u32 %v687, 4294901760
  %893 = vmatmul.mubr.f32.gmra.mxu0 %v892
  %v894 = vpop.f32.mrf.mxu0
  %v895 = vadd.f32 %v774, %v894
  %v896 = vpop.f32.mrf.mxu0
  %897 = vmatprep.mubr.f32.mxu0 0.0
  %v898 = vand.u32 %v690, 4294901760
  %899 = vmatmul.mubr.f32.gmra.mxu0 %v898
  %v900 = vpop.f32.mrf.mxu0
  %v901 = vadd.f32 %v784, %v900
  %v902 = vpop.f32.mrf.mxu0
  %903 = vmatprep.mubr.f32.mxu0 0.0
  %v904 = vand.u32 %v693, 4294901760
  %905 = vmatmul.mubr.f32.gmra.mxu0 %v904
  %v906 = vpop.f32.mrf.mxu0
  %v907 = vadd.f32 %v794, %v906
  %v908 = vpop.f32.mrf.mxu0
  %909 = vmatprep.mubr.f32.mxu0 0.0
  %v910 = vand.u32 %v696, 4294901760
  %911 = vmatmul.mubr.f32.gmra.mxu0 %v910
  %v912 = vpop.f32.mrf.mxu0
  %v913 = vadd.f32 %v804, %v912
  %v914 = vpop.f32.mrf.mxu0
  %915 = vdwg.mxu0
  %916 = vmatprep.subr.mxu0 0.0
  %917 = vmatpush1.msra.mxu0 0.0
  %918 = vmatprep.subr.mxu0 0.0
  %919 = vmatpush1.msra.mxu0 0.0
  %920 = vmatprep.subr.mxu0 0.0
  %921 = vmatpush1.msra.mxu0 0.0
  %922 = vmatprep.subr.mxu0 0.0
  %923 = vmatpush1.msra.mxu0 0.0
  %924 = vmatprep.subr.mxu0 0.0
  %925 = vmatpush1.msra.mxu0 0.0
  %926 = vmatprep.subr.mxu0 0.0
  %927 = vmatpush1.msra.mxu0 0.0
  %928 = vmatprep.subr.mxu0 0.0
  %929 = vmatpush1.msra.mxu0 0.0
  %930 = vmatprep.subr.mxu0 0.0
  %931 = vmatpush1.msra.mxu0 0.0
  %932 = vmatprep.subr.mxu0 0.0
  %933 = vmatpush1.msra.mxu0 0.0
  %934 = vmatprep.subr.mxu0 0.0
  %935 = vmatpush1.msra.mxu0 0.0
  %936 = vmatprep.subr.mxu0 0.0
  %937 = vmatpush1.msra.mxu0 0.0
  %938 = vmatprep.subr.mxu0 0.0
  %939 = vmatpush1.msra.mxu0 0.0
  %940 = vmatprep.subr.mxu0 0.0
  %v941 = vand.u32 %v656, 4294901760
  %v942 = vsub.f32 %v656, %v941
  %943 = vmatpush1.msra.mxu0 %v942
  %944 = vmatprep.subr.mxu0 0.0
  %v945 = vand.u32 %v655, 4294901760
  %v946 = vsub.f32 %v655, %v945
  %947 = vmatpush1.msra.mxu0 %v946
  %948 = vmatprep.subr.mxu0 0.0
  %v949 = vand.u32 %v654, 4294901760
  %v950 = vsub.f32 %v654, %v949
  %951 = vmatpush1.msra.mxu0 %v950
  %952 = vmatprep.subr.mxu0 0.0
  %v953 = vand.u32 %v653, 4294901760
  %v954 = vsub.f32 %v653, %v953
  %955 = vmatpush1.msra.mxu0 %v954
  %956 = vmatprep.subr.mxu0 0.0
  %957 = vmatpush2.msra.mxu0 0.0
  %958 = vmatprep.subr.mxu0 0.0
  %959 = vmatpush2.msra.mxu0 0.0
  %960 = vmatprep.subr.mxu0 0.0
  %961 = vmatpush2.msra.mxu0 0.0
  %962 = vmatprep.subr.mxu0 0.0
  %963 = vmatpush2.msra.mxu0 0.0
  %964 = vmatprep.subr.mxu0 0.0
  %965 = vmatpush2.msra.mxu0 0.0
  %966 = vmatprep.subr.mxu0 0.0
  %967 = vmatpush2.msra.mxu0 0.0
  %968 = vmatprep.subr.mxu0 0.0
  %969 = vmatpush2.msra.mxu0 0.0
  %970 = vmatprep.subr.mxu0 0.0
  %971 = vmatpush2.msra.mxu0 0.0
  %972 = vmatprep.subr.mxu0 0.0
  %973 = vmatpush2.msra.mxu0 0.0
  %974 = vmatprep.subr.mxu0 0.0
  %975 = vmatpush2.msra.mxu0 0.0
  %976 = vmatprep.subr.mxu0 0.0
  %977 = vmatpush2.msra.mxu0 0.0
  %978 = vmatprep.subr.mxu0 0.0
  %979 = vmatpush2.msra.mxu0 0.0
  %980 = vmatprep.subr.mxu0 0.0
  %981 = vmatpush2.msra.mxu0 0.0
  %982 = vmatprep.subr.mxu0 0.0
  %983 = vmatpush2.msra.mxu0 0.0
  %984 = vmatprep.subr.mxu0 0.0
  %985 = vmatpush2.msra.mxu0 0.0
  %986 = vmatprep.subr.mxu0 0.0
  %987 = vmatpush2.msra.mxu0 0.0
  %988 = vmatprep.mubr.f32.mxu0 0.0
  %v989 = vand.u32 %v687, 4294901760
  %v990 = vsub.f32 %v687, %v989
  %991 = vmatmul.mubr.f32.gmra.mxu0 %v990
  %v992 = vpop.f32.mrf.mxu0
  %v993 = vadd.f32 %v895, %v992
  %v994 = vpop.f32.mrf.mxu0
  %995 = vmatprep.mubr.f32.mxu0 0.0
  %v996 = vand.u32 %v690, 4294901760
  %v997 = vsub.f32 %v690, %v996
  %998 = vmatmul.mubr.f32.gmra.mxu0 %v997
  %v999 = vpop.f32.mrf.mxu0
  %v1000 = vadd.f32 %v901, %v999
  %v1001 = vpop.f32.mrf.mxu0
  %1002 = vmatprep.mubr.f32.mxu0 0.0
  %v1003 = vand.u32 %v693, 4294901760
  %v1004 = vsub.f32 %v693, %v1003
  %1005 = vmatmul.mubr.f32.gmra.mxu0 %v1004
  %v1006 = vpop.f32.mrf.mxu0
  %v1007 = vadd.f32 %v907, %v1006
  %v1008 = vpop.f32.mrf.mxu0
  %1009 = vmatprep.mubr.f32.mxu0 0.0
  %v1010 = vand.u32 %v696, 4294901760
  %v1011 = vsub.f32 %v696, %v1010
  %1012 = vmatmul.mubr.f32.gmra.mxu0 %v1011
  %v1013 = vpop.f32.mrf.mxu0
  %v1014 = vadd.f32 %v913, %v1013
  %v1015 = vpop.f32.mrf.mxu0
  %1016 = vdwg.mxu0
  %1017 = vmatprep.subr.mxu0 0.0
  %1018 = vmatpush1.msra.mxu0 0.0
  %1019 = vmatprep.subr.mxu0 0.0
  %1020 = vmatpush1.msra.mxu0 0.0
  %1021 = vmatprep.subr.mxu0 0.0
  %1022 = vmatpush1.msra.mxu0 0.0
  %1023 = vmatprep.subr.mxu0 0.0
  %1024 = vmatpush1.msra.mxu0 0.0
  %1025 = vmatprep.subr.mxu0 0.0
  %1026 = vmatpush1.msra.mxu0 0.0
  %1027 = vmatprep.subr.mxu0 0.0
  %1028 = vmatpush1.msra.mxu0 0.0
  %1029 = vmatprep.subr.mxu0 0.0
  %1030 = vmatpush1.msra.mxu0 0.0
  %1031 = vmatprep.subr.mxu0 0.0
  %1032 = vmatpush1.msra.mxu0 0.0
  %1033 = vmatprep.subr.mxu0 0.0
  %1034 = vmatpush1.msra.mxu0 0.0
  %1035 = vmatprep.subr.mxu0 0.0
  %1036 = vmatpush1.msra.mxu0 0.0
  %1037 = vmatprep.subr.mxu0 0.0
  %1038 = vmatpush1.msra.mxu0 0.0
  %1039 = vmatprep.subr.mxu0 0.0
  %1040 = vmatpush1.msra.mxu0 0.0
  %1041 = vmatprep.subr.mxu0 0.0
  %v1042 = vand.u32 %v656, 4294901760
  %1043 = vmatpush1.msra.mxu0 %v1042
  %1044 = vmatprep.subr.mxu0 0.0
  %v1045 = vand.u32 %v655, 4294901760
  %1046 = vmatpush1.msra.mxu0 %v1045
  %1047 = vmatprep.subr.mxu0 0.0
  %v1048 = vand.u32 %v654, 4294901760
  %1049 = vmatpush1.msra.mxu0 %v1048
  %1050 = vmatprep.subr.mxu0 0.0
  %v1051 = vand.u32 %v653, 4294901760
  %1052 = vmatpush1.msra.mxu0 %v1051
  %1053 = vmatprep.subr.mxu0 0.0
  %1054 = vmatpush2.msra.mxu0 0.0
  %1055 = vmatprep.subr.mxu0 0.0
  %1056 = vmatpush2.msra.mxu0 0.0
  %1057 = vmatprep.subr.mxu0 0.0
  %1058 = vmatpush2.msra.mxu0 0.0
  %1059 = vmatprep.subr.mxu0 0.0
  %1060 = vmatpush2.msra.mxu0 0.0
  %1061 = vmatprep.subr.mxu0 0.0
  %1062 = vmatpush2.msra.mxu0 0.0
  %1063 = vmatprep.subr.mxu0 0.0
  %1064 = vmatpush2.msra.mxu0 0.0
  %1065 = vmatprep.subr.mxu0 0.0
  %1066 = vmatpush2.msra.mxu0 0.0
  %1067 = vmatprep.subr.mxu0 0.0
  %1068 = vmatpush2.msra.mxu0 0.0
  %1069 = vmatprep.subr.mxu0 0.0
  %1070 = vmatpush2.msra.mxu0 0.0
  %1071 = vmatprep.subr.mxu0 0.0
  %1072 = vmatpush2.msra.mxu0 0.0
  %1073 = vmatprep.subr.mxu0 0.0
  %1074 = vmatpush2.msra.mxu0 0.0
  %1075 = vmatprep.subr.mxu0 0.0
  %1076 = vmatpush2.msra.mxu0 0.0
  %1077 = vmatprep.subr.mxu0 0.0
  %1078 = vmatpush2.msra.mxu0 0.0
  %1079 = vmatprep.subr.mxu0 0.0
  %1080 = vmatpush2.msra.mxu0 0.0
  %1081 = vmatprep.subr.mxu0 0.0
  %1082 = vmatpush2.msra.mxu0 0.0
  %1083 = vmatprep.subr.mxu0 0.0
  %1084 = vmatpush2.msra.mxu0 0.0
  %1085 = vmatprep.mubr.f32.mxu0 0.0
  %v1086 = vand.u32 %v687, 4294901760
  %v1087 = vsub.f32 %v687, %v1086
  %v1088 = vand.u32 %v1087, 4294901760
  %1089 = vmatmul.mubr.f32.gmra.mxu0 %v1088
  %v1090 = vpop.f32.mrf.mxu0
  %v1091 = vadd.f32 %v993, %v1090
  %v1092 = vpop.f32.mrf.mxu0
  %1093 = vmatprep.mubr.f32.mxu0 0.0
  %v1094 = vand.u32 %v690, 4294901760
  %v1095 = vsub.f32 %v690, %v1094
  %v1096 = vand.u32 %v1095, 4294901760
  %1097 = vmatmul.mubr.f32.gmra.mxu0 %v1096
  %v1098 = vpop.f32.mrf.mxu0
  %v1099 = vadd.f32 %v1000, %v1098
  %v1100 = vpop.f32.mrf.mxu0
  %1101 = vmatprep.mubr.f32.mxu0 0.0
  %v1102 = vand.u32 %v693, 4294901760
  %v1103 = vsub.f32 %v693, %v1102
  %v1104 = vand.u32 %v1103, 4294901760
  %1105 = vmatmul.mubr.f32.gmra.mxu0 %v1104
  %v1106 = vpop.f32.mrf.mxu0
  %v1107 = vadd.f32 %v1007, %v1106
  %v1108 = vpop.f32.mrf.mxu0
  %1109 = vmatprep.mubr.f32.mxu0 0.0
  %v1110 = vand.u32 %v696, 4294901760
  %v1111 = vsub.f32 %v696, %v1110
  %v1112 = vand.u32 %v1111, 4294901760
  %1113 = vmatmul.mubr.f32.gmra.mxu0 %v1112
  %v1114 = vpop.f32.mrf.mxu0
  %v1115 = vadd.f32 %v1014, %v1114
  %v1116 = vpop.f32.mrf.mxu0
  %1117 = vdwg.mxu0
  %1118 = vmatprep.subr.mxu0 0.0
  %1119 = vmatpush1.msra.mxu0 0.0
  %1120 = vmatprep.subr.mxu0 0.0
  %1121 = vmatpush1.msra.mxu0 0.0
  %1122 = vmatprep.subr.mxu0 0.0
  %1123 = vmatpush1.msra.mxu0 0.0
  %1124 = vmatprep.subr.mxu0 0.0
  %1125 = vmatpush1.msra.mxu0 0.0
  %1126 = vmatprep.subr.mxu0 0.0
  %1127 = vmatpush1.msra.mxu0 0.0
  %1128 = vmatprep.subr.mxu0 0.0
  %1129 = vmatpush1.msra.mxu0 0.0
  %1130 = vmatprep.subr.mxu0 0.0
  %1131 = vmatpush1.msra.mxu0 0.0
  %1132 = vmatprep.subr.mxu0 0.0
  %1133 = vmatpush1.msra.mxu0 0.0
  %1134 = vmatprep.subr.mxu0 0.0
  %1135 = vmatpush1.msra.mxu0 0.0
  %1136 = vmatprep.subr.mxu0 0.0
  %1137 = vmatpush1.msra.mxu0 0.0
  %1138 = vmatprep.subr.mxu0 0.0
  %1139 = vmatpush1.msra.mxu0 0.0
  %1140 = vmatprep.subr.mxu0 0.0
  %1141 = vmatpush1.msra.mxu0 0.0
  %1142 = vmatprep.subr.mxu0 0.0
  %v1143 = vand.u32 %v656, 4294901760
  %v1144 = vsub.f32 %v656, %v1143
  %v1145 = vand.u32 %v1144, 4294901760
  %1146 = vmatpush1.msra.mxu0 %v1145
  %1147 = vmatprep.subr.mxu0 0.0
  %v1148 = vand.u32 %v655, 4294901760
  %v1149 = vsub.f32 %v655, %v1148
  %v1150 = vand.u32 %v1149, 4294901760
  %1151 = vmatpush1.msra.mxu0 %v1150
  %1152 = vmatprep.subr.mxu0 0.0
  %v1153 = vand.u32 %v654, 4294901760
  %v1154 = vsub.f32 %v654, %v1153
  %v1155 = vand.u32 %v1154, 4294901760
  %1156 = vmatpush1.msra.mxu0 %v1155
  %1157 = vmatprep.subr.mxu0 0.0
  %v1158 = vand.u32 %v653, 4294901760
  %v1159 = vsub.f32 %v653, %v1158
  %v1160 = vand.u32 %v1159, 4294901760
  %1161 = vmatpush1.msra.mxu0 %v1160
  %1162 = vmatprep.subr.mxu0 0.0
  %1163 = vmatpush2.msra.mxu0 0.0
  %1164 = vmatprep.subr.mxu0 0.0
  %1165 = vmatpush2.msra.mxu0 0.0
  %1166 = vmatprep.subr.mxu0 0.0
  %1167 = vmatpush2.msra.mxu0 0.0
  %1168 = vmatprep.subr.mxu0 0.0
  %1169 = vmatpush2.msra.mxu0 0.0
  %1170 = vmatprep.subr.mxu0 0.0
  %1171 = vmatpush2.msra.mxu0 0.0
  %1172 = vmatprep.subr.mxu0 0.0
  %1173 = vmatpush2.msra.mxu0 0.0
  %1174 = vmatprep.subr.mxu0 0.0
  %1175 = vmatpush2.msra.mxu0 0.0
  %1176 = vmatprep.subr.mxu0 0.0
  %1177 = vmatpush2.msra.mxu0 0.0
  %1178 = vmatprep.subr.mxu0 0.0
  %1179 = vmatpush2.msra.mxu0 0.0
  %1180 = vmatprep.subr.mxu0 0.0
  %1181 = vmatpush2.msra.mxu0 0.0
  %1182 = vmatprep.subr.mxu0 0.0
  %1183 = vmatpush2.msra.mxu0 0.0
  %1184 = vmatprep.subr.mxu0 0.0
  %1185 = vmatpush2.msra.mxu0 0.0
  %1186 = vmatprep.subr.mxu0 0.0
  %1187 = vmatpush2.msra.mxu0 0.0
  %1188 = vmatprep.subr.mxu0 0.0
  %1189 = vmatpush2.msra.mxu0 0.0
  %1190 = vmatprep.subr.mxu0 0.0
  %1191 = vmatpush2.msra.mxu0 0.0
  %1192 = vmatprep.subr.mxu0 0.0
  %1193 = vmatpush2.msra.mxu0 0.0
  %1194 = vmatprep.mubr.f32.mxu0 0.0
  %v1195 = vand.u32 %v687, 4294901760
  %1196 = vmatmul.mubr.f32.gmra.mxu0 %v1195
  %v1197 = vpop.f32.mrf.mxu0
  %v1198 = vadd.f32 %v1091, %v1197
  %v1199 = vpop.f32.mrf.mxu0
  %1200 = vmatprep.mubr.f32.mxu0 0.0
  %v1201 = vand.u32 %v690, 4294901760
  %1202 = vmatmul.mubr.f32.gmra.mxu0 %v1201
  %v1203 = vpop.f32.mrf.mxu0
  %v1204 = vadd.f32 %v1099, %v1203
  %v1205 = vpop.f32.mrf.mxu0
  %1206 = vmatprep.mubr.f32.mxu0 0.0
  %v1207 = vand.u32 %v693, 4294901760
  %1208 = vmatmul.mubr.f32.gmra.mxu0 %v1207
  %v1209 = vpop.f32.mrf.mxu0
  %v1210 = vadd.f32 %v1107, %v1209
  %v1211 = vpop.f32.mrf.mxu0
  %1212 = vmatprep.mubr.f32.mxu0 0.0
  %v1213 = vand.u32 %v696, 4294901760
  %1214 = vmatmul.mubr.f32.gmra.mxu0 %v1213
  %v1215 = vpop.f32.mrf.mxu0
  %v1216 = vadd.f32 %v1115, %v1215
  %v1217 = vpop.f32.mrf.mxu0
  %1218 = vdwg.mxu0
  %1219 = vmatprep.subr.mxu0 0.0
  %1220 = vmatpush1.msra.mxu0 0.0
  %1221 = vmatprep.subr.mxu0 0.0
  %1222 = vmatpush1.msra.mxu0 0.0
  %1223 = vmatprep.subr.mxu0 0.0
  %1224 = vmatpush1.msra.mxu0 0.0
  %1225 = vmatprep.subr.mxu0 0.0
  %1226 = vmatpush1.msra.mxu0 0.0
  %1227 = vmatprep.subr.mxu0 0.0
  %1228 = vmatpush1.msra.mxu0 0.0
  %1229 = vmatprep.subr.mxu0 0.0
  %1230 = vmatpush1.msra.mxu0 0.0
  %1231 = vmatprep.subr.mxu0 0.0
  %1232 = vmatpush1.msra.mxu0 0.0
  %1233 = vmatprep.subr.mxu0 0.0
  %1234 = vmatpush1.msra.mxu0 0.0
  %1235 = vmatprep.subr.mxu0 0.0
  %1236 = vmatpush1.msra.mxu0 0.0
  %1237 = vmatprep.subr.mxu0 0.0
  %1238 = vmatpush1.msra.mxu0 0.0
  %1239 = vmatprep.subr.mxu0 0.0
  %1240 = vmatpush1.msra.mxu0 0.0
  %1241 = vmatprep.subr.mxu0 0.0
  %1242 = vmatpush1.msra.mxu0 0.0
  %1243 = vmatprep.subr.mxu0 0.0
  %v1244 = vand.u32 %v656, 4294901760
  %1245 = vmatpush1.msra.mxu0 %v1244
  %1246 = vmatprep.subr.mxu0 0.0
  %v1247 = vand.u32 %v655, 4294901760
  %1248 = vmatpush1.msra.mxu0 %v1247
  %1249 = vmatprep.subr.mxu0 0.0
  %v1250 = vand.u32 %v654, 4294901760
  %1251 = vmatpush1.msra.mxu0 %v1250
  %1252 = vmatprep.subr.mxu0 0.0
  %v1253 = vand.u32 %v653, 4294901760
  %1254 = vmatpush1.msra.mxu0 %v1253
  %1255 = vmatprep.subr.mxu0 0.0
  %1256 = vmatpush2.msra.mxu0 0.0
  %1257 = vmatprep.subr.mxu0 0.0
  %1258 = vmatpush2.msra.mxu0 0.0
  %1259 = vmatprep.subr.mxu0 0.0
  %1260 = vmatpush2.msra.mxu0 0.0
  %1261 = vmatprep.subr.mxu0 0.0
  %1262 = vmatpush2.msra.mxu0 0.0
  %1263 = vmatprep.subr.mxu0 0.0
  %1264 = vmatpush2.msra.mxu0 0.0
  %1265 = vmatprep.subr.mxu0 0.0
  %1266 = vmatpush2.msra.mxu0 0.0
  %1267 = vmatprep.subr.mxu0 0.0
  %1268 = vmatpush2.msra.mxu0 0.0
  %1269 = vmatprep.subr.mxu0 0.0
  %1270 = vmatpush2.msra.mxu0 0.0
  %1271 = vmatprep.subr.mxu0 0.0
  %1272 = vmatpush2.msra.mxu0 0.0
  %1273 = vmatprep.subr.mxu0 0.0
  %1274 = vmatpush2.msra.mxu0 0.0
  %1275 = vmatprep.subr.mxu0 0.0
  %1276 = vmatpush2.msra.mxu0 0.0
  %1277 = vmatprep.subr.mxu0 0.0
  %1278 = vmatpush2.msra.mxu0 0.0
  %1279 = vmatprep.subr.mxu0 0.0
  %1280 = vmatpush2.msra.mxu0 0.0
  %1281 = vmatprep.subr.mxu0 0.0
  %1282 = vmatpush2.msra.mxu0 0.0
  %1283 = vmatprep.subr.mxu0 0.0
  %1284 = vmatpush2.msra.mxu0 0.0
  %1285 = vmatprep.subr.mxu0 0.0
  %1286 = vmatpush2.msra.mxu0 0.0
  %1287 = vmatprep.mubr.f32.mxu0 0.0
  %v1288 = vand.u32 %v687, 4294901760
  %1289 = vmatmul.mubr.f32.gmra.mxu0 %v1288
  %v1290 = vpop.f32.mrf.mxu0
  %v1291 = vadd.f32 %v1198, %v1290
  %v1292 = vpop.f32.mrf.mxu0
  %1293 = vmatprep.mubr.f32.mxu0 0.0
  %v1294 = vand.u32 %v690, 4294901760
  %1295 = vmatmul.mubr.f32.gmra.mxu0 %v1294
  %v1296 = vpop.f32.mrf.mxu0
  %v1297 = vadd.f32 %v1204, %v1296
  %v1298 = vpop.f32.mrf.mxu0
  %1299 = vmatprep.mubr.f32.mxu0 0.0
  %v1300 = vand.u32 %v693, 4294901760
  %1301 = vmatmul.mubr.f32.gmra.mxu0 %v1300
  %v1302 = vpop.f32.mrf.mxu0
  %v1303 = vadd.f32 %v1210, %v1302
  %v1304 = vpop.f32.mrf.mxu0
  %1305 = vmatprep.mubr.f32.mxu0 0.0
  %v1306 = vand.u32 %v696, 4294901760
  %1307 = vmatmul.mubr.f32.gmra.mxu0 %v1306
  %v1308 = vpop.f32.mrf.mxu0
  %v1309 = vadd.f32 %v1216, %v1308
  %v1310 = vpop.f32.mrf.mxu0
  %1311 = vdwg.mxu0
  %v1312 = vtanh.pop %v1291
  %v1313 = vtanh.pop %v1297
  %v1314 = vtanh.pop %v1303
  %v1315 = vtanh.pop %v1309
  %v1316 = vld [vmem:[%s5] sm:$0xff]
  %v1317 = vld [vmem:[%s5 + $0x8] sm:$0xff]
  %v1318 = vld [vmem:[%s5 + $0x10] sm:$0xff]
  %v1319 = vld [vmem:[%s5 + $0x18] sm:$0xff]
  %v1320 = vld [vmem:[%s6] sm:$0xff]
  %v1321 = vld [vmem:[%s6 + $0x8] sm:$0xff]
  %v1322 = vld [vmem:[%s6 + $0x10] sm:$0xff]
  %v1323 = vld [vmem:[%s6 + $0x18] sm:$0xff]
  %1325 = vset.pattern.permute.xlu0 0
  %1326 = vperm.xlu0 %1325, %v1320
  %v1327 = vpop.permute.xlu0 %1326
  %1330 = vset.pattern.permute.xlu0 0
  %1331 = vperm.xlu0 %1330, %v1321
  %v1332 = vpop.permute.xlu0 %1331
  %1335 = vset.pattern.permute.xlu0 0
  %1336 = vperm.xlu0 %1335, %v1322
  %v1337 = vpop.permute.xlu0 %1336
  %1340 = vset.pattern.permute.xlu0 0
  %1341 = vperm.xlu0 %1340, %v1323
  %v1342 = vpop.permute.xlu0 %1341
  %v1345 = vsel %vm685, %v1316, 0
  %v1348 = vsel %vm685, %v1317, 0
  %v1351 = vsel %vm685, %v1318, 0
  %v1354 = vsel %vm685, %v1319, 0
  %1356 = vmatprep.subr.mxu0 0.0
  %1357 = vmatpush1.msra.mxu0 0.0
  %1358 = vmatprep.subr.mxu0 0.0
  %1359 = vmatpush1.msra.mxu0 0.0
  %1360 = vmatprep.subr.mxu0 0.0
  %1361 = vmatpush1.msra.mxu0 0.0
  %1362 = vmatprep.subr.mxu0 0.0
  %1363 = vmatpush1.msra.mxu0 0.0
  %1364 = vmatprep.subr.mxu0 0.0
  %1365 = vmatpush1.msra.mxu0 0.0
  %1366 = vmatprep.subr.mxu0 0.0
  %1367 = vmatpush1.msra.mxu0 0.0
  %1368 = vmatprep.subr.mxu0 0.0
  %1369 = vmatpush1.msra.mxu0 0.0
  %1370 = vmatprep.subr.mxu0 0.0
  %1371 = vmatpush1.msra.mxu0 0.0
  %1372 = vmatprep.subr.mxu0 0.0
  %1373 = vmatpush1.msra.mxu0 0.0
  %1374 = vmatprep.subr.mxu0 0.0
  %1375 = vmatpush1.msra.mxu0 0.0
  %1376 = vmatprep.subr.mxu0 0.0
  %1377 = vmatpush1.msra.mxu0 0.0
  %1378 = vmatprep.subr.mxu0 0.0
  %1379 = vmatpush1.msra.mxu0 0.0
  %1380 = vmatprep.subr.mxu0 0.0
  %v1381 = vand.u32 %v1315, 4294901760
  %1382 = vmatpush1.msra.mxu0 %v1381
  %1383 = vmatprep.subr.mxu0 0.0
  %v1384 = vand.u32 %v1314, 4294901760
  %1385 = vmatpush1.msra.mxu0 %v1384
  %1386 = vmatprep.subr.mxu0 0.0
  %v1387 = vand.u32 %v1313, 4294901760
  %1388 = vmatpush1.msra.mxu0 %v1387
  %1389 = vmatprep.subr.mxu0 0.0
  %v1390 = vand.u32 %v1312, 4294901760
  %1391 = vmatpush1.msra.mxu0 %v1390
  %1392 = vmatprep.subr.mxu0 0.0
  %1393 = vmatpush2.msra.mxu0 0.0
  %1394 = vmatprep.subr.mxu0 0.0
  %1395 = vmatpush2.msra.mxu0 0.0
  %1396 = vmatprep.subr.mxu0 0.0
  %1397 = vmatpush2.msra.mxu0 0.0
  %1398 = vmatprep.subr.mxu0 0.0
  %1399 = vmatpush2.msra.mxu0 0.0
  %1400 = vmatprep.subr.mxu0 0.0
  %1401 = vmatpush2.msra.mxu0 0.0
  %1402 = vmatprep.subr.mxu0 0.0
  %1403 = vmatpush2.msra.mxu0 0.0
  %1404 = vmatprep.subr.mxu0 0.0
  %1405 = vmatpush2.msra.mxu0 0.0
  %1406 = vmatprep.subr.mxu0 0.0
  %1407 = vmatpush2.msra.mxu0 0.0
  %1408 = vmatprep.subr.mxu0 0.0
  %1409 = vmatpush2.msra.mxu0 0.0
  %1410 = vmatprep.subr.mxu0 0.0
  %1411 = vmatpush2.msra.mxu0 0.0
  %1412 = vmatprep.subr.mxu0 0.0
  %1413 = vmatpush2.msra.mxu0 0.0
  %1414 = vmatprep.subr.mxu0 0.0
  %1415 = vmatpush2.msra.mxu0 0.0
  %1416 = vmatprep.subr.mxu0 0.0
  %1417 = vmatpush2.msra.mxu0 0.0
  %1418 = vmatprep.subr.mxu0 0.0
  %1419 = vmatpush2.msra.mxu0 0.0
  %1420 = vmatprep.subr.mxu0 0.0
  %1421 = vmatpush2.msra.mxu0 0.0
  %1422 = vmatprep.subr.mxu0 0.0
  %1423 = vmatpush2.msra.mxu0 0.0
  %1424 = vmatprep.mubr.f32.mxu0 0.0
  %v1425 = vand.u32 %v1345, 4294901760
  %v1426 = vsub.f32 %v1345, %v1425
  %v1427 = vand.u32 %v1426, 4294901760
  %v1428 = vsub.f32 %v1426, %v1427
  %v1429 = vand.u32 %v1428, 4294901760
  %1430 = vmatmul.mubr.f32.gmra.mxu0 %v1429
  %v1431 = vpop.f32.mrf.mxu0
  %v1432 = vadd.f32 %v1327, %v1431
  %v1433 = vpop.f32.mrf.mxu0
  %1434 = vmatprep.mubr.f32.mxu0 0.0
  %v1435 = vand.u32 %v1348, 4294901760
  %v1436 = vsub.f32 %v1348, %v1435
  %v1437 = vand.u32 %v1436, 4294901760
  %v1438 = vsub.f32 %v1436, %v1437
  %v1439 = vand.u32 %v1438, 4294901760
  %1440 = vmatmul.mubr.f32.gmra.mxu0 %v1439
  %v1441 = vpop.f32.mrf.mxu0
  %v1442 = vadd.f32 %v1332, %v1441
  %v1443 = vpop.f32.mrf.mxu0
  %1444 = vmatprep.mubr.f32.mxu0 0.0
  %v1445 = vand.u32 %v1351, 4294901760
  %v1446 = vsub.f32 %v1351, %v1445
  %v1447 = vand.u32 %v1446, 4294901760
  %v1448 = vsub.f32 %v1446, %v1447
  %v1449 = vand.u32 %v1448, 4294901760
  %1450 = vmatmul.mubr.f32.gmra.mxu0 %v1449
  %v1451 = vpop.f32.mrf.mxu0
  %v1452 = vadd.f32 %v1337, %v1451
  %v1453 = vpop.f32.mrf.mxu0
  %1454 = vmatprep.mubr.f32.mxu0 0.0
  %v1455 = vand.u32 %v1354, 4294901760
  %v1456 = vsub.f32 %v1354, %v1455
  %v1457 = vand.u32 %v1456, 4294901760
  %v1458 = vsub.f32 %v1456, %v1457
  %v1459 = vand.u32 %v1458, 4294901760
  %1460 = vmatmul.mubr.f32.gmra.mxu0 %v1459
  %v1461 = vpop.f32.mrf.mxu0
  %v1462 = vadd.f32 %v1342, %v1461
  %v1463 = vpop.f32.mrf.mxu0
  %1464 = vdwg.mxu0
  %1465 = vmatprep.subr.mxu0 0.0
  %1466 = vmatpush1.msra.mxu0 0.0
  %1467 = vmatprep.subr.mxu0 0.0
  %1468 = vmatpush1.msra.mxu0 0.0
  %1469 = vmatprep.subr.mxu0 0.0
  %1470 = vmatpush1.msra.mxu0 0.0
  %1471 = vmatprep.subr.mxu0 0.0
  %1472 = vmatpush1.msra.mxu0 0.0
  %1473 = vmatprep.subr.mxu0 0.0
  %1474 = vmatpush1.msra.mxu0 0.0
  %1475 = vmatprep.subr.mxu0 0.0
  %1476 = vmatpush1.msra.mxu0 0.0
  %1477 = vmatprep.subr.mxu0 0.0
  %1478 = vmatpush1.msra.mxu0 0.0
  %1479 = vmatprep.subr.mxu0 0.0
  %1480 = vmatpush1.msra.mxu0 0.0
  %1481 = vmatprep.subr.mxu0 0.0
  %1482 = vmatpush1.msra.mxu0 0.0
  %1483 = vmatprep.subr.mxu0 0.0
  %1484 = vmatpush1.msra.mxu0 0.0
  %1485 = vmatprep.subr.mxu0 0.0
  %1486 = vmatpush1.msra.mxu0 0.0
  %1487 = vmatprep.subr.mxu0 0.0
  %1488 = vmatpush1.msra.mxu0 0.0
  %1489 = vmatprep.subr.mxu0 0.0
  %v1490 = vand.u32 %v1315, 4294901760
  %v1491 = vsub.f32 %v1315, %v1490
  %v1492 = vand.u32 %v1491, 4294901760
  %v1493 = vsub.f32 %v1491, %v1492
  %v1494 = vand.u32 %v1493, 4294901760
  %1495 = vmatpush1.msra.mxu0 %v1494
  %1496 = vmatprep.subr.mxu0 0.0
  %v1497 = vand.u32 %v1314, 4294901760
  %v1498 = vsub.f32 %v1314, %v1497
  %v1499 = vand.u32 %v1498, 4294901760
  %v1500 = vsub.f32 %v1498, %v1499
  %v1501 = vand.u32 %v1500, 4294901760
  %1502 = vmatpush1.msra.mxu0 %v1501
  %1503 = vmatprep.subr.mxu0 0.0
  %v1504 = vand.u32 %v1313, 4294901760
  %v1505 = vsub.f32 %v1313, %v1504
  %v1506 = vand.u32 %v1505, 4294901760
  %v1507 = vsub.f32 %v1505, %v1506
  %v1508 = vand.u32 %v1507, 4294901760
  %1509 = vmatpush1.msra.mxu0 %v1508
  %1510 = vmatprep.subr.mxu0 0.0
  %v1511 = vand.u32 %v1312, 4294901760
  %v1512 = vsub.f32 %v1312, %v1511
  %v1513 = vand.u32 %v1512, 4294901760
  %v1514 = vsub.f32 %v1512, %v1513
  %v1515 = vand.u32 %v1514, 4294901760
  %1516 = vmatpush1.msra.mxu0 %v1515
  %1517 = vmatprep.subr.mxu0 0.0
  %1518 = vmatpush2.msra.mxu0 0.0
  %1519 = vmatprep.subr.mxu0 0.0
  %1520 = vmatpush2.msra.mxu0 0.0
  %1521 = vmatprep.subr.mxu0 0.0
  %1522 = vmatpush2.msra.mxu0 0.0
  %1523 = vmatprep.subr.mxu0 0.0
  %1524 = vmatpush2.msra.mxu0 0.0
  %1525 = vmatprep.subr.mxu0 0.0
  %1526 = vmatpush2.msra.mxu0 0.0
  %1527 = vmatprep.subr.mxu0 0.0
  %1528 = vmatpush2.msra.mxu0 0.0
  %1529 = vmatprep.subr.mxu0 0.0
  %1530 = vmatpush2.msra.mxu0 0.0
  %1531 = vmatprep.subr.mxu0 0.0
  %1532 = vmatpush2.msra.mxu0 0.0
  %1533 = vmatprep.subr.mxu0 0.0
  %1534 = vmatpush2.msra.mxu0 0.0
  %1535 = vmatprep.subr.mxu0 0.0
  %1536 = vmatpush2.msra.mxu0 0.0
  %1537 = vmatprep.subr.mxu0 0.0
  %1538 = vmatpush2.msra.mxu0 0.0
  %1539 = vmatprep.subr.mxu0 0.0
  %1540 = vmatpush2.msra.mxu0 0.0
  %1541 = vmatprep.subr.mxu0 0.0
  %1542 = vmatpush2.msra.mxu0 0.0
  %1543 = vmatprep.subr.mxu0 0.0
  %1544 = vmatpush2.msra.mxu0 0.0
  %1545 = vmatprep.subr.mxu0 0.0
  %1546 = vmatpush2.msra.mxu0 0.0
  %1547 = vmatprep.subr.mxu0 0.0
  %1548 = vmatpush2.msra.mxu0 0.0
  %1549 = vmatprep.mubr.f32.mxu0 0.0
  %v1550 = vand.u32 %v1345, 4294901760
  %1551 = vmatmul.mubr.f32.gmra.mxu0 %v1550
  %v1552 = vpop.f32.mrf.mxu0
  %v1553 = vadd.f32 %v1432, %v1552
  %v1554 = vpop.f32.mrf.mxu0
  %1555 = vmatprep.mubr.f32.mxu0 0.0
  %v1556 = vand.u32 %v1348, 4294901760
  %1557 = vmatmul.mubr.f32.gmra.mxu0 %v1556
  %v1558 = vpop.f32.mrf.mxu0
  %v1559 = vadd.f32 %v1442, %v1558
  %v1560 = vpop.f32.mrf.mxu0
  %1561 = vmatprep.mubr.f32.mxu0 0.0
  %v1562 = vand.u32 %v1351, 4294901760
  %1563 = vmatmul.mubr.f32.gmra.mxu0 %v1562
  %v1564 = vpop.f32.mrf.mxu0
  %v1565 = vadd.f32 %v1452, %v1564
  %v1566 = vpop.f32.mrf.mxu0
  %1567 = vmatprep.mubr.f32.mxu0 0.0
  %v1568 = vand.u32 %v1354, 4294901760
  %1569 = vmatmul.mubr.f32.gmra.mxu0 %v1568
  %v1570 = vpop.f32.mrf.mxu0
  %v1571 = vadd.f32 %v1462, %v1570
  %v1572 = vpop.f32.mrf.mxu0
  %1573 = vdwg.mxu0
  %1574 = vmatprep.subr.mxu0 0.0
  %1575 = vmatpush1.msra.mxu0 0.0
  %1576 = vmatprep.subr.mxu0 0.0
  %1577 = vmatpush1.msra.mxu0 0.0
  %1578 = vmatprep.subr.mxu0 0.0
  %1579 = vmatpush1.msra.mxu0 0.0
  %1580 = vmatprep.subr.mxu0 0.0
  %1581 = vmatpush1.msra.mxu0 0.0
  %1582 = vmatprep.subr.mxu0 0.0
  %1583 = vmatpush1.msra.mxu0 0.0
  %1584 = vmatprep.subr.mxu0 0.0
  %1585 = vmatpush1.msra.mxu0 0.0
  %1586 = vmatprep.subr.mxu0 0.0
  %1587 = vmatpush1.msra.mxu0 0.0
  %1588 = vmatprep.subr.mxu0 0.0
  %1589 = vmatpush1.msra.mxu0 0.0
  %1590 = vmatprep.subr.mxu0 0.0
  %1591 = vmatpush1.msra.mxu0 0.0
  %1592 = vmatprep.subr.mxu0 0.0
  %1593 = vmatpush1.msra.mxu0 0.0
  %1594 = vmatprep.subr.mxu0 0.0
  %1595 = vmatpush1.msra.mxu0 0.0
  %1596 = vmatprep.subr.mxu0 0.0
  %1597 = vmatpush1.msra.mxu0 0.0
  %1598 = vmatprep.subr.mxu0 0.0
  %v1599 = vand.u32 %v1315, 4294901760
  %v1600 = vsub.f32 %v1315, %v1599
  %1601 = vmatpush1.msra.mxu0 %v1600
  %1602 = vmatprep.subr.mxu0 0.0
  %v1603 = vand.u32 %v1314, 4294901760
  %v1604 = vsub.f32 %v1314, %v1603
  %1605 = vmatpush1.msra.mxu0 %v1604
  %1606 = vmatprep.subr.mxu0 0.0
  %v1607 = vand.u32 %v1313, 4294901760
  %v1608 = vsub.f32 %v1313, %v1607
  %1609 = vmatpush1.msra.mxu0 %v1608
  %1610 = vmatprep.subr.mxu0 0.0
  %v1611 = vand.u32 %v1312, 4294901760
  %v1612 = vsub.f32 %v1312, %v1611
  %1613 = vmatpush1.msra.mxu0 %v1612
  %1614 = vmatprep.subr.mxu0 0.0
  %1615 = vmatpush2.msra.mxu0 0.0
  %1616 = vmatprep.subr.mxu0 0.0
  %1617 = vmatpush2.msra.mxu0 0.0
  %1618 = vmatprep.subr.mxu0 0.0
  %1619 = vmatpush2.msra.mxu0 0.0
  %1620 = vmatprep.subr.mxu0 0.0
  %1621 = vmatpush2.msra.mxu0 0.0
  %1622 = vmatprep.subr.mxu0 0.0
  %1623 = vmatpush2.msra.mxu0 0.0
  %1624 = vmatprep.subr.mxu0 0.0
  %1625 = vmatpush2.msra.mxu0 0.0
  %1626 = vmatprep.subr.mxu0 0.0
  %1627 = vmatpush2.msra.mxu0 0.0
  %1628 = vmatprep.subr.mxu0 0.0
  %1629 = vmatpush2.msra.mxu0 0.0
  %1630 = vmatprep.subr.mxu0 0.0
  %1631 = vmatpush2.msra.mxu0 0.0
  %1632 = vmatprep.subr.mxu0 0.0
  %1633 = vmatpush2.msra.mxu0 0.0
  %1634 = vmatprep.subr.mxu0 0.0
  %1635 = vmatpush2.msra.mxu0 0.0
  %1636 = vmatprep.subr.mxu0 0.0
  %1637 = vmatpush2.msra.mxu0 0.0
  %1638 = vmatprep.subr.mxu0 0.0
  %1639 = vmatpush2.msra.mxu0 0.0
  %1640 = vmatprep.subr.mxu0 0.0
  %1641 = vmatpush2.msra.mxu0 0.0
  %1642 = vmatprep.subr.mxu0 0.0
  %1643 = vmatpush2.msra.mxu0 0.0
  %1644 = vmatprep.subr.mxu0 0.0
  %1645 = vmatpush2.msra.mxu0 0.0
  %1646 = vmatprep.mubr.f32.mxu0 0.0
  %v1647 = vand.u32 %v1345, 4294901760
  %v1648 = vsub.f32 %v1345, %v1647
  %1649 = vmatmul.mubr.f32.gmra.mxu0 %v1648
  %v1650 = vpop.f32.mrf.mxu0
  %v1651 = vadd.f32 %v1553, %v1650
  %v1652 = vpop.f32.mrf.mxu0
  %1653 = vmatprep.mubr.f32.mxu0 0.0
  %v1654 = vand.u32 %v1348, 4294901760
  %v1655 = vsub.f32 %v1348, %v1654
  %1656 = vmatmul.mubr.f32.gmra.mxu0 %v1655
  %v1657 = vpop.f32.mrf.mxu0
  %v1658 = vadd.f32 %v1559, %v1657
  %v1659 = vpop.f32.mrf.mxu0
  %1660 = vmatprep.mubr.f32.mxu0 0.0
  %v1661 = vand.u32 %v1351, 4294901760
  %v1662 = vsub.f32 %v1351, %v1661
  %1663 = vmatmul.mubr.f32.gmra.mxu0 %v1662
  %v1664 = vpop.f32.mrf.mxu0
  %v1665 = vadd.f32 %v1565, %v1664
  %v1666 = vpop.f32.mrf.mxu0
  %1667 = vmatprep.mubr.f32.mxu0 0.0
  %v1668 = vand.u32 %v1354, 4294901760
  %v1669 = vsub.f32 %v1354, %v1668
  %1670 = vmatmul.mubr.f32.gmra.mxu0 %v1669
  %v1671 = vpop.f32.mrf.mxu0
  %v1672 = vadd.f32 %v1571, %v1671
  %v1673 = vpop.f32.mrf.mxu0
  %1674 = vdwg.mxu0
  %1675 = vmatprep.subr.mxu0 0.0
  %1676 = vmatpush1.msra.mxu0 0.0
  %1677 = vmatprep.subr.mxu0 0.0
  %1678 = vmatpush1.msra.mxu0 0.0
  %1679 = vmatprep.subr.mxu0 0.0
  %1680 = vmatpush1.msra.mxu0 0.0
  %1681 = vmatprep.subr.mxu0 0.0
  %1682 = vmatpush1.msra.mxu0 0.0
  %1683 = vmatprep.subr.mxu0 0.0
  %1684 = vmatpush1.msra.mxu0 0.0
  %1685 = vmatprep.subr.mxu0 0.0
  %1686 = vmatpush1.msra.mxu0 0.0
  %1687 = vmatprep.subr.mxu0 0.0
  %1688 = vmatpush1.msra.mxu0 0.0
  %1689 = vmatprep.subr.mxu0 0.0
  %1690 = vmatpush1.msra.mxu0 0.0
  %1691 = vmatprep.subr.mxu0 0.0
  %1692 = vmatpush1.msra.mxu0 0.0
  %1693 = vmatprep.subr.mxu0 0.0
  %1694 = vmatpush1.msra.mxu0 0.0
  %1695 = vmatprep.subr.mxu0 0.0
  %1696 = vmatpush1.msra.mxu0 0.0
  %1697 = vmatprep.subr.mxu0 0.0
  %1698 = vmatpush1.msra.mxu0 0.0
  %1699 = vmatprep.subr.mxu0 0.0
  %v1700 = vand.u32 %v1315, 4294901760
  %1701 = vmatpush1.msra.mxu0 %v1700
  %1702 = vmatprep.subr.mxu0 0.0
  %v1703 = vand.u32 %v1314, 4294901760
  %1704 = vmatpush1.msra.mxu0 %v1703
  %1705 = vmatprep.subr.mxu0 0.0
  %v1706 = vand.u32 %v1313, 4294901760
  %1707 = vmatpush1.msra.mxu0 %v1706
  %1708 = vmatprep.subr.mxu0 0.0
  %v1709 = vand.u32 %v1312, 4294901760
  %1710 = vmatpush1.msra.mxu0 %v1709
  %1711 = vmatprep.subr.mxu0 0.0
  %1712 = vmatpush2.msra.mxu0 0.0
  %1713 = vmatprep.subr.mxu0 0.0
  %1714 = vmatpush2.msra.mxu0 0.0
  %1715 = vmatprep.subr.mxu0 0.0
  %1716 = vmatpush2.msra.mxu0 0.0
  %1717 = vmatprep.subr.mxu0 0.0
  %1718 = vmatpush2.msra.mxu0 0.0
  %1719 = vmatprep.subr.mxu0 0.0
  %1720 = vmatpush2.msra.mxu0 0.0
  %1721 = vmatprep.subr.mxu0 0.0
  %1722 = vmatpush2.msra.mxu0 0.0
  %1723 = vmatprep.subr.mxu0 0.0
  %1724 = vmatpush2.msra.mxu0 0.0
  %1725 = vmatprep.subr.mxu0 0.0
  %1726 = vmatpush2.msra.mxu0 0.0
  %1727 = vmatprep.subr.mxu0 0.0
  %1728 = vmatpush2.msra.mxu0 0.0
  %1729 = vmatprep.subr.mxu0 0.0
  %1730 = vmatpush2.msra.mxu0 0.0
  %1731 = vmatprep.subr.mxu0 0.0
  %1732 = vmatpush2.msra.mxu0 0.0
  %1733 = vmatprep.subr.mxu0 0.0
  %1734 = vmatpush2.msra.mxu0 0.0
  %1735 = vmatprep.subr.mxu0 0.0
  %1736 = vmatpush2.msra.mxu0 0.0
  %1737 = vmatprep.subr.mxu0 0.0
  %1738 = vmatpush2.msra.mxu0 0.0
  %1739 = vmatprep.subr.mxu0 0.0
  %1740 = vmatpush2.msra.mxu0 0.0
  %1741 = vmatprep.subr.mxu0 0.0
  %1742 = vmatpush2.msra.mxu0 0.0
  %1743 = vmatprep.mubr.f32.mxu0 0.0
  %v1744 = vand.u32 %v1345, 4294901760
  %v1745 = vsub.f32 %v1345, %v1744
  %v1746 = vand.u32 %v1745, 4294901760
  %1747 = vmatmul.mubr.f32.gmra.mxu0 %v1746
  %v1748 = vpop.f32.mrf.mxu0
  %v1749 = vadd.f32 %v1651, %v1748
  %v1750 = vpop.f32.mrf.mxu0
  %1751 = vmatprep.mubr.f32.mxu0 0.0
  %v1752 = vand.u32 %v1348, 4294901760
  %v1753 = vsub.f32 %v1348, %v1752
  %v1754 = vand.u32 %v1753, 4294901760
  %1755 = vmatmul.mubr.f32.gmra.mxu0 %v1754
  %v1756 = vpop.f32.mrf.mxu0
  %v1757 = vadd.f32 %v1658, %v1756
  %v1758 = vpop.f32.mrf.mxu0
  %1759 = vmatprep.mubr.f32.mxu0 0.0
  %v1760 = vand.u32 %v1351, 4294901760
  %v1761 = vsub.f32 %v1351, %v1760
  %v1762 = vand.u32 %v1761, 4294901760
  %1763 = vmatmul.mubr.f32.gmra.mxu0 %v1762
  %v1764 = vpop.f32.mrf.mxu0
  %v1765 = vadd.f32 %v1665, %v1764
  %v1766 = vpop.f32.mrf.mxu0
  %1767 = vmatprep.mubr.f32.mxu0 0.0
  %v1768 = vand.u32 %v1354, 4294901760
  %v1769 = vsub.f32 %v1354, %v1768
  %v1770 = vand.u32 %v1769, 4294901760
  %1771 = vmatmul.mubr.f32.gmra.mxu0 %v1770
  %v1772 = vpop.f32.mrf.mxu0
  %v1773 = vadd.f32 %v1672, %v1772
  %v1774 = vpop.f32.mrf.mxu0
  %1775 = vdwg.mxu0
  %1776 = vmatprep.subr.mxu0 0.0
  %1777 = vmatpush1.msra.mxu0 0.0
  %1778 = vmatprep.subr.mxu0 0.0
  %1779 = vmatpush1.msra.mxu0 0.0
  %1780 = vmatprep.subr.mxu0 0.0
  %1781 = vmatpush1.msra.mxu0 0.0
  %1782 = vmatprep.subr.mxu0 0.0
  %1783 = vmatpush1.msra.mxu0 0.0
  %1784 = vmatprep.subr.mxu0 0.0
  %1785 = vmatpush1.msra.mxu0 0.0
  %1786 = vmatprep.subr.mxu0 0.0
  %1787 = vmatpush1.msra.mxu0 0.0
  %1788 = vmatprep.subr.mxu0 0.0
  %1789 = vmatpush1.msra.mxu0 0.0
  %1790 = vmatprep.subr.mxu0 0.0
  %1791 = vmatpush1.msra.mxu0 0.0
  %1792 = vmatprep.subr.mxu0 0.0
  %1793 = vmatpush1.msra.mxu0 0.0
  %1794 = vmatprep.subr.mxu0 0.0
  %1795 = vmatpush1.msra.mxu0 0.0
  %1796 = vmatprep.subr.mxu0 0.0
  %1797 = vmatpush1.msra.mxu0 0.0
  %1798 = vmatprep.subr.mxu0 0.0
  %1799 = vmatpush1.msra.mxu0 0.0
  %1800 = vmatprep.subr.mxu0 0.0
  %v1801 = vand.u32 %v1315, 4294901760
  %v1802 = vsub.f32 %v1315, %v1801
  %v1803 = vand.u32 %v1802, 4294901760
  %1804 = vmatpush1.msra.mxu0 %v1803
  %1805 = vmatprep.subr.mxu0 0.0
  %v1806 = vand.u32 %v1314, 4294901760
  %v1807 = vsub.f32 %v1314, %v1806
  %v1808 = vand.u32 %v1807, 4294901760
  %1809 = vmatpush1.msra.mxu0 %v1808
  %1810 = vmatprep.subr.mxu0 0.0
  %v1811 = vand.u32 %v1313, 4294901760
  %v1812 = vsub.f32 %v1313, %v1811
  %v1813 = vand.u32 %v1812, 4294901760
  %1814 = vmatpush1.msra.mxu0 %v1813
  %1815 = vmatprep.subr.mxu0 0.0
  %v1816 = vand.u32 %v1312, 4294901760
  %v1817 = vsub.f32 %v1312, %v1816
  %v1818 = vand.u32 %v1817, 4294901760
  %1819 = vmatpush1.msra.mxu0 %v1818
  %1820 = vmatprep.subr.mxu0 0.0
  %1821 = vmatpush2.msra.mxu0 0.0
  %1822 = vmatprep.subr.mxu0 0.0
  %1823 = vmatpush2.msra.mxu0 0.0
  %1824 = vmatprep.subr.mxu0 0.0
  %1825 = vmatpush2.msra.mxu0 0.0
  %1826 = vmatprep.subr.mxu0 0.0
  %1827 = vmatpush2.msra.mxu0 0.0
  %1828 = vmatprep.subr.mxu0 0.0
  %1829 = vmatpush2.msra.mxu0 0.0
  %1830 = vmatprep.subr.mxu0 0.0
  %1831 = vmatpush2.msra.mxu0 0.0
  %1832 = vmatprep.subr.mxu0 0.0
  %1833 = vmatpush2.msra.mxu0 0.0
  %1834 = vmatprep.subr.mxu0 0.0
  %1835 = vmatpush2.msra.mxu0 0.0
  %1836 = vmatprep.subr.mxu0 0.0
  %1837 = vmatpush2.msra.mxu0 0.0
  %1838 = vmatprep.subr.mxu0 0.0
  %1839 = vmatpush2.msra.mxu0 0.0
  %1840 = vmatprep.subr.mxu0 0.0
  %1841 = vmatpush2.msra.mxu0 0.0
  %1842 = vmatprep.subr.mxu0 0.0
  %1843 = vmatpush2.msra.mxu0 0.0
  %1844 = vmatprep.subr.mxu0 0.0
  %1845 = vmatpush2.msra.mxu0 0.0
  %1846 = vmatprep.subr.mxu0 0.0
  %1847 = vmatpush2.msra.mxu0 0.0
  %1848 = vmatprep.subr.mxu0 0.0
  %1849 = vmatpush2.msra.mxu0 0.0
  %1850 = vmatprep.subr.mxu0 0.0
  %1851 = vmatpush2.msra.mxu0 0.0
  %1852 = vmatprep.mubr.f32.mxu0 0.0
  %v1853 = vand.u32 %v1345, 4294901760
  %1854 = vmatmul.mubr.f32.gmra.mxu0 %v1853
  %v1855 = vpop.f32.mrf.mxu0
  %v1856 = vadd.f32 %v1749, %v1855
  %v1857 = vpop.f32.mrf.mxu0
  %1858 = vmatprep.mubr.f32.mxu0 0.0
  %v1859 = vand.u32 %v1348, 4294901760
  %1860 = vmatmul.mubr.f32.gmra.mxu0 %v1859
  %v1861 = vpop.f32.mrf.mxu0
  %v1862 = vadd.f32 %v1757, %v1861
  %v1863 = vpop.f32.mrf.mxu0
  %1864 = vmatprep.mubr.f32.mxu0 0.0
  %v1865 = vand.u32 %v1351, 4294901760
  %1866 = vmatmul.mubr.f32.gmra.mxu0 %v1865
  %v1867 = vpop.f32.mrf.mxu0
  %v1868 = vadd.f32 %v1765, %v1867
  %v1869 = vpop.f32.mrf.mxu0
  %1870 = vmatprep.mubr.f32.mxu0 0.0
  %v1871 = vand.u32 %v1354, 4294901760
  %1872 = vmatmul.mubr.f32.gmra.mxu0 %v1871
  %v1873 = vpop.f32.mrf.mxu0
  %v1874 = vadd.f32 %v1773, %v1873
  %v1875 = vpop.f32.mrf.mxu0
  %1876 = vdwg.mxu0
  %1877 = vmatprep.subr.mxu0 0.0
  %1878 = vmatpush1.msra.mxu0 0.0
  %1879 = vmatprep.subr.mxu0 0.0
  %1880 = vmatpush1.msra.mxu0 0.0
  %1881 = vmatprep.subr.mxu0 0.0
  %1882 = vmatpush1.msra.mxu0 0.0
  %1883 = vmatprep.subr.mxu0 0.0
  %1884 = vmatpush1.msra.mxu0 0.0
  %1885 = vmatprep.subr.mxu0 0.0
  %1886 = vmatpush1.msra.mxu0 0.0
  %1887 = vmatprep.subr.mxu0 0.0
  %1888 = vmatpush1.msra.mxu0 0.0
  %1889 = vmatprep.subr.mxu0 0.0
  %1890 = vmatpush1.msra.mxu0 0.0
  %1891 = vmatprep.subr.mxu0 0.0
  %1892 = vmatpush1.msra.mxu0 0.0
  %1893 = vmatprep.subr.mxu0 0.0
  %1894 = vmatpush1.msra.mxu0 0.0
  %1895 = vmatprep.subr.mxu0 0.0
  %1896 = vmatpush1.msra.mxu0 0.0
  %1897 = vmatprep.subr.mxu0 0.0
  %1898 = vmatpush1.msra.mxu0 0.0
  %1899 = vmatprep.subr.mxu0 0.0
  %1900 = vmatpush1.msra.mxu0 0.0
  %1901 = vmatprep.subr.mxu0 0.0
  %v1902 = vand.u32 %v1315, 4294901760
  %1903 = vmatpush1.msra.mxu0 %v1902
  %1904 = vmatprep.subr.mxu0 0.0
  %v1905 = vand.u32 %v1314, 4294901760
  %1906 = vmatpush1.msra.mxu0 %v1905
  %1907 = vmatprep.subr.mxu0 0.0
  %v1908 = vand.u32 %v1313, 4294901760
  %1909 = vmatpush1.msra.mxu0 %v1908
  %1910 = vmatprep.subr.mxu0 0.0
  %v1911 = vand.u32 %v1312, 4294901760
  %1912 = vmatpush1.msra.mxu0 %v1911
  %1913 = vmatprep.subr.mxu0 0.0
  %1914 = vmatpush2.msra.mxu0 0.0
  %1915 = vmatprep.subr.mxu0 0.0
  %1916 = vmatpush2.msra.mxu0 0.0
  %1917 = vmatprep.subr.mxu0 0.0
  %1918 = vmatpush2.msra.mxu0 0.0
  %1919 = vmatprep.subr.mxu0 0.0
  %1920 = vmatpush2.msra.mxu0 0.0
  %1921 = vmatprep.subr.mxu0 0.0
  %1922 = vmatpush2.msra.mxu0 0.0
  %1923 = vmatprep.subr.mxu0 0.0
  %1924 = vmatpush2.msra.mxu0 0.0
  %1925 = vmatprep.subr.mxu0 0.0
  %1926 = vmatpush2.msra.mxu0 0.0
  %1927 = vmatprep.subr.mxu0 0.0
  %1928 = vmatpush2.msra.mxu0 0.0
  %1929 = vmatprep.subr.mxu0 0.0
  %1930 = vmatpush2.msra.mxu0 0.0
  %1931 = vmatprep.subr.mxu0 0.0
  %1932 = vmatpush2.msra.mxu0 0.0
  %1933 = vmatprep.subr.mxu0 0.0
  %1934 = vmatpush2.msra.mxu0 0.0
  %1935 = vmatprep.subr.mxu0 0.0
  %1936 = vmatpush2.msra.mxu0 0.0
  %1937 = vmatprep.subr.mxu0 0.0
  %1938 = vmatpush2.msra.mxu0 0.0
  %1939 = vmatprep.subr.mxu0 0.0
  %1940 = vmatpush2.msra.mxu0 0.0
  %1941 = vmatprep.subr.mxu0 0.0
  %1942 = vmatpush2.msra.mxu0 0.0
  %1943 = vmatprep.subr.mxu0 0.0
  %1944 = vmatpush2.msra.mxu0 0.0
  %1945 = vmatprep.mubr.f32.mxu0 0.0
  %v1946 = vand.u32 %v1345, 4294901760
  %1947 = vmatmul.mubr.f32.gmra.mxu0 %v1946
  %v1948 = vpop.f32.mrf.mxu0
  %v1949 = vadd.f32 %v1856, %v1948
  %v1950 = vpop.f32.mrf.mxu0
  %1951 = vmatprep.mubr.f32.mxu0 0.0
  %v1952 = vand.u32 %v1348, 4294901760
  %1953 = vmatmul.mubr.f32.gmra.mxu0 %v1952
  %v1954 = vpop.f32.mrf.mxu0
  %v1955 = vadd.f32 %v1862, %v1954
  %v1956 = vpop.f32.mrf.mxu0
  %1957 = vmatprep.mubr.f32.mxu0 0.0
  %v1958 = vand.u32 %v1351, 4294901760
  %1959 = vmatmul.mubr.f32.gmra.mxu0 %v1958
  %v1960 = vpop.f32.mrf.mxu0
  %v1961 = vadd.f32 %v1868, %v1960
  %v1962 = vpop.f32.mrf.mxu0
  %1963 = vmatprep.mubr.f32.mxu0 0.0
  %v1964 = vand.u32 %v1354, 4294901760
  %1965 = vmatmul.mubr.f32.gmra.mxu0 %v1964
  %v1966 = vpop.f32.mrf.mxu0
  %v1967 = vadd.f32 %v1874, %v1966
  %v1968 = vpop.f32.mrf.mxu0
  %1969 = vdwg.mxu0
  %v1970 = vtanh.pop %v1949
  %v1971 = vtanh.pop %v1955
  %v1972 = vtanh.pop %v1961
  %v1973 = vtanh.pop %v1967
  %v1974 = vld [vmem:[%s7] sm:$0x3]
  %v1975 = vld [vmem:[%s8] sm:$0x3]
  %1977 = vset.pattern.permute.xlu0 0
  %1978 = vperm.xlu0 %1977, %v1975
  %v1979 = vpop.permute.xlu0 %1978
  %v1982 = vsel %vm685, %v1974, 0
  %1984 = vmatprep.subr.mxu0 0.0
  %1985 = vmatpush1.msra.mxu0 0.0
  %1986 = vmatprep.subr.mxu0 0.0
  %1987 = vmatpush1.msra.mxu0 0.0
  %1988 = vmatprep.subr.mxu0 0.0
  %1989 = vmatpush1.msra.mxu0 0.0
  %1990 = vmatprep.subr.mxu0 0.0
  %1991 = vmatpush1.msra.mxu0 0.0
  %1992 = vmatprep.subr.mxu0 0.0
  %1993 = vmatpush1.msra.mxu0 0.0
  %1994 = vmatprep.subr.mxu0 0.0
  %1995 = vmatpush1.msra.mxu0 0.0
  %1996 = vmatprep.subr.mxu0 0.0
  %1997 = vmatpush1.msra.mxu0 0.0
  %1998 = vmatprep.subr.mxu0 0.0
  %1999 = vmatpush1.msra.mxu0 0.0
  %2000 = vmatprep.subr.mxu0 0.0
  %2001 = vmatpush1.msra.mxu0 0.0
  %2002 = vmatprep.subr.mxu0 0.0
  %2003 = vmatpush1.msra.mxu0 0.0
  %2004 = vmatprep.subr.mxu0 0.0
  %2005 = vmatpush1.msra.mxu0 0.0
  %2006 = vmatprep.subr.mxu0 0.0
  %2007 = vmatpush1.msra.mxu0 0.0
  %2008 = vmatprep.subr.mxu0 0.0
  %v2009 = vand.u32 %v1973, 4294901760
  %2010 = vmatpush1.msra.mxu0 %v2009
  %2011 = vmatprep.subr.mxu0 0.0
  %v2012 = vand.u32 %v1972, 4294901760
  %2013 = vmatpush1.msra.mxu0 %v2012
  %2014 = vmatprep.subr.mxu0 0.0
  %v2015 = vand.u32 %v1971, 4294901760
  %2016 = vmatpush1.msra.mxu0 %v2015
  %2017 = vmatprep.subr.mxu0 0.0
  %v2018 = vand.u32 %v1970, 4294901760
  %2019 = vmatpush1.msra.mxu0 %v2018
  %2020 = vmatprep.subr.mxu0 0.0
  %2021 = vmatpush2.msra.mxu0 0.0
  %2022 = vmatprep.subr.mxu0 0.0
  %2023 = vmatpush2.msra.mxu0 0.0
  %2024 = vmatprep.subr.mxu0 0.0
  %2025 = vmatpush2.msra.mxu0 0.0
  %2026 = vmatprep.subr.mxu0 0.0
  %2027 = vmatpush2.msra.mxu0 0.0
  %2028 = vmatprep.subr.mxu0 0.0
  %2029 = vmatpush2.msra.mxu0 0.0
  %2030 = vmatprep.subr.mxu0 0.0
  %2031 = vmatpush2.msra.mxu0 0.0
  %2032 = vmatprep.subr.mxu0 0.0
  %2033 = vmatpush2.msra.mxu0 0.0
  %2034 = vmatprep.subr.mxu0 0.0
  %2035 = vmatpush2.msra.mxu0 0.0
  %2036 = vmatprep.subr.mxu0 0.0
  %2037 = vmatpush2.msra.mxu0 0.0
  %2038 = vmatprep.subr.mxu0 0.0
  %2039 = vmatpush2.msra.mxu0 0.0
  %2040 = vmatprep.subr.mxu0 0.0
  %2041 = vmatpush2.msra.mxu0 0.0
  %2042 = vmatprep.subr.mxu0 0.0
  %2043 = vmatpush2.msra.mxu0 0.0
  %2044 = vmatprep.subr.mxu0 0.0
  %2045 = vmatpush2.msra.mxu0 0.0
  %2046 = vmatprep.subr.mxu0 0.0
  %2047 = vmatpush2.msra.mxu0 0.0
  %2048 = vmatprep.subr.mxu0 0.0
  %2049 = vmatpush2.msra.mxu0 0.0
  %2050 = vmatprep.subr.mxu0 0.0
  %2051 = vmatpush2.msra.mxu0 0.0
  %2052 = vmatprep.mubr.f32.mxu0 0.0
  %v2053 = vand.u32 %v1982, 4294901760
  %v2054 = vsub.f32 %v1982, %v2053
  %v2055 = vand.u32 %v2054, 4294901760
  %v2056 = vsub.f32 %v2054, %v2055
  %v2057 = vand.u32 %v2056, 4294901760
  %2058 = vmatmul.mubr.f32.gmra.mxu0 %v2057
  %v2059 = vpop.f32.mrf.mxu0
  %v2060 = vadd.f32 %v1979, %v2059
  %v2061 = vpop.f32.mrf.mxu0
  %2062 = vdwg.mxu0
  %2063 = vmatprep.subr.mxu0 0.0
  %2064 = vmatpush1.msra.mxu0 0.0
  %2065 = vmatprep.subr.mxu0 0.0
  %2066 = vmatpush1.msra.mxu0 0.0
  %2067 = vmatprep.subr.mxu0 0.0
  %2068 = vmatpush1.msra.mxu0 0.0
  %2069 = vmatprep.subr.mxu0 0.0
  %2070 = vmatpush1.msra.mxu0 0.0
  %2071 = vmatprep.subr.mxu0 0.0
  %2072 = vmatpush1.msra.mxu0 0.0
  %2073 = vmatprep.subr.mxu0 0.0
  %2074 = vmatpush1.msra.mxu0 0.0
  %2075 = vmatprep.subr.mxu0 0.0
  %2076 = vmatpush1.msra.mxu0 0.0
  %2077 = vmatprep.subr.mxu0 0.0
  %2078 = vmatpush1.msra.mxu0 0.0
  %2079 = vmatprep.subr.mxu0 0.0
  %2080 = vmatpush1.msra.mxu0 0.0
  %2081 = vmatprep.subr.mxu0 0.0
  %2082 = vmatpush1.msra.mxu0 0.0
  %2083 = vmatprep.subr.mxu0 0.0
  %2084 = vmatpush1.msra.mxu0 0.0
  %2085 = vmatprep.subr.mxu0 0.0
  %2086 = vmatpush1.msra.mxu0 0.0
  %2087 = vmatprep.subr.mxu0 0.0
  %v2088 = vand.u32 %v1973, 4294901760
  %v2089 = vsub.f32 %v1973, %v2088
  %v2090 = vand.u32 %v2089, 4294901760
  %v2091 = vsub.f32 %v2089, %v2090
  %v2092 = vand.u32 %v2091, 4294901760
  %2093 = vmatpush1.msra.mxu0 %v2092
  %2094 = vmatprep.subr.mxu0 0.0
  %v2095 = vand.u32 %v1972, 4294901760
  %v2096 = vsub.f32 %v1972, %v2095
  %v2097 = vand.u32 %v2096, 4294901760
  %v2098 = vsub.f32 %v2096, %v2097
  %v2099 = vand.u32 %v2098, 4294901760
  %2100 = vmatpush1.msra.mxu0 %v2099
  %2101 = vmatprep.subr.mxu0 0.0
  %v2102 = vand.u32 %v1971, 4294901760
  %v2103 = vsub.f32 %v1971, %v2102
  %v2104 = vand.u32 %v2103, 4294901760
  %v2105 = vsub.f32 %v2103, %v2104
  %v2106 = vand.u32 %v2105, 4294901760
  %2107 = vmatpush1.msra.mxu0 %v2106
  %2108 = vmatprep.subr.mxu0 0.0
  %v2109 = vand.u32 %v1970, 4294901760
  %v2110 = vsub.f32 %v1970, %v2109
  %v2111 = vand.u32 %v2110, 4294901760
  %v2112 = vsub.f32 %v2110, %v2111
  %v2113 = vand.u32 %v2112, 4294901760
  %2114 = vmatpush1.msra.mxu0 %v2113
  %2115 = vmatprep.subr.mxu0 0.0
  %2116 = vmatpush2.msra.mxu0 0.0
  %2117 = vmatprep.subr.mxu0 0.0
  %2118 = vmatpush2.msra.mxu0 0.0
  %2119 = vmatprep.subr.mxu0 0.0
  %2120 = vmatpush2.msra.mxu0 0.0
  %2121 = vmatprep.subr.mxu0 0.0
  %2122 = vmatpush2.msra.mxu0 0.0
  %2123 = vmatprep.subr.mxu0 0.0
  %2124 = vmatpush2.msra.mxu0 0.0
  %2125 = vmatprep.subr.mxu0 0.0
  %2126 = vmatpush2.msra.mxu0 0.0
  %2127 = vmatprep.subr.mxu0 0.0
  %2128 = vmatpush2.msra.mxu0 0.0
  %2129 = vmatprep.subr.mxu0 0.0
  %2130 = vmatpush2.msra.mxu0 0.0
  %2131 = vmatprep.subr.mxu0 0.0
  %2132 = vmatpush2.msra.mxu0 0.0
  %2133 = vmatprep.subr.mxu0 0.0
  %2134 = vmatpush2.msra.mxu0 0.0
  %2135 = vmatprep.subr.mxu0 0.0
  %2136 = vmatpush2.msra.mxu0 0.0
  %2137 = vmatprep.subr.mxu0 0.0
  %2138 = vmatpush2.msra.mxu0 0.0
  %2139 = vmatprep.subr.mxu0 0.0
  %2140 = vmatpush2.msra.mxu0 0.0
  %2141 = vmatprep.subr.mxu0 0.0
  %2142 = vmatpush2.msra.mxu0 0.0
  %2143 = vmatprep.subr.mxu0 0.0
  %2144 = vmatpush2.msra.mxu0 0.0
  %2145 = vmatprep.subr.mxu0 0.0
  %2146 = vmatpush2.msra.mxu0 0.0
  %2147 = vmatprep.mubr.f32.mxu0 0.0
  %v2148 = vand.u32 %v1982, 4294901760
  %2149 = vmatmul.mubr.f32.gmra.mxu0 %v2148
  %v2150 = vpop.f32.mrf.mxu0
  %v2151 = vadd.f32 %v2060, %v2150
  %v2152 = vpop.f32.mrf.mxu0
  %2153 = vdwg.mxu0
  %2154 = vmatprep.subr.mxu0 0.0
  %2155 = vmatpush1.msra.mxu0 0.0
  %2156 = vmatprep.subr.mxu0 0.0
  %2157 = vmatpush1.msra.mxu0 0.0
  %2158 = vmatprep.subr.mxu0 0.0
  %2159 = vmatpush1.msra.mxu0 0.0
  %2160 = vmatprep.subr.mxu0 0.0
  %2161 = vmatpush1.msra.mxu0 0.0
  %2162 = vmatprep.subr.mxu0 0.0
  %2163 = vmatpush1.msra.mxu0 0.0
  %2164 = vmatprep.subr.mxu0 0.0
  %2165 = vmatpush1.msra.mxu0 0.0
  %2166 = vmatprep.subr.mxu0 0.0
  %2167 = vmatpush1.msra.mxu0 0.0
  %2168 = vmatprep.subr.mxu0 0.0
  %2169 = vmatpush1.msra.mxu0 0.0
  %2170 = vmatprep.subr.mxu0 0.0
  %2171 = vmatpush1.msra.mxu0 0.0
  %2172 = vmatprep.subr.mxu0 0.0
  %2173 = vmatpush1.msra.mxu0 0.0
  %2174 = vmatprep.subr.mxu0 0.0
  %2175 = vmatpush1.msra.mxu0 0.0
  %2176 = vmatprep.subr.mxu0 0.0
  %2177 = vmatpush1.msra.mxu0 0.0
  %2178 = vmatprep.subr.mxu0 0.0
  %v2179 = vand.u32 %v1973, 4294901760
  %v2180 = vsub.f32 %v1973, %v2179
  %2181 = vmatpush1.msra.mxu0 %v2180
  %2182 = vmatprep.subr.mxu0 0.0
  %v2183 = vand.u32 %v1972, 4294901760
  %v2184 = vsub.f32 %v1972, %v2183
  %2185 = vmatpush1.msra.mxu0 %v2184
  %2186 = vmatprep.subr.mxu0 0.0
  %v2187 = vand.u32 %v1971, 4294901760
  %v2188 = vsub.f32 %v1971, %v2187
  %2189 = vmatpush1.msra.mxu0 %v2188
  %2190 = vmatprep.subr.mxu0 0.0
  %v2191 = vand.u32 %v1970, 4294901760
  %v2192 = vsub.f32 %v1970, %v2191
  %2193 = vmatpush1.msra.mxu0 %v2192
  %2194 = vmatprep.subr.mxu0 0.0
  %2195 = vmatpush2.msra.mxu0 0.0
  %2196 = vmatprep.subr.mxu0 0.0
  %2197 = vmatpush2.msra.mxu0 0.0
  %2198 = vmatprep.subr.mxu0 0.0
  %2199 = vmatpush2.msra.mxu0 0.0
  %2200 = vmatprep.subr.mxu0 0.0
  %2201 = vmatpush2.msra.mxu0 0.0
  %2202 = vmatprep.subr.mxu0 0.0
  %2203 = vmatpush2.msra.mxu0 0.0
  %2204 = vmatprep.subr.mxu0 0.0
  %2205 = vmatpush2.msra.mxu0 0.0
  %2206 = vmatprep.subr.mxu0 0.0
  %2207 = vmatpush2.msra.mxu0 0.0
  %2208 = vmatprep.subr.mxu0 0.0
  %2209 = vmatpush2.msra.mxu0 0.0
  %2210 = vmatprep.subr.mxu0 0.0
  %2211 = vmatpush2.msra.mxu0 0.0
  %2212 = vmatprep.subr.mxu0 0.0
  %2213 = vmatpush2.msra.mxu0 0.0
  %2214 = vmatprep.subr.mxu0 0.0
  %2215 = vmatpush2.msra.mxu0 0.0
  %2216 = vmatprep.subr.mxu0 0.0
  %2217 = vmatpush2.msra.mxu0 0.0
  %2218 = vmatprep.subr.mxu0 0.0
  %2219 = vmatpush2.msra.mxu0 0.0
  %2220 = vmatprep.subr.mxu0 0.0
  %2221 = vmatpush2.msra.mxu0 0.0
  %2222 = vmatprep.subr.mxu0 0.0
  %2223 = vmatpush2.msra.mxu0 0.0
  %2224 = vmatprep.subr.mxu0 0.0
  %2225 = vmatpush2.msra.mxu0 0.0
  %2226 = vmatprep.mubr.f32.mxu0 0.0
  %v2227 = vand.u32 %v1982, 4294901760
  %v2228 = vsub.f32 %v1982, %v2227
  %2229 = vmatmul.mubr.f32.gmra.mxu0 %v2228
  %v2230 = vpop.f32.mrf.mxu0
  %v2231 = vadd.f32 %v2151, %v2230
  %v2232 = vpop.f32.mrf.mxu0
  %2233 = vdwg.mxu0
  %2234 = vmatprep.subr.mxu0 0.0
  %2235 = vmatpush1.msra.mxu0 0.0
  %2236 = vmatprep.subr.mxu0 0.0
  %2237 = vmatpush1.msra.mxu0 0.0
  %2238 = vmatprep.subr.mxu0 0.0
  %2239 = vmatpush1.msra.mxu0 0.0
  %2240 = vmatprep.subr.mxu0 0.0
  %2241 = vmatpush1.msra.mxu0 0.0
  %2242 = vmatprep.subr.mxu0 0.0
  %2243 = vmatpush1.msra.mxu0 0.0
  %2244 = vmatprep.subr.mxu0 0.0
  %2245 = vmatpush1.msra.mxu0 0.0
  %2246 = vmatprep.subr.mxu0 0.0
  %2247 = vmatpush1.msra.mxu0 0.0
  %2248 = vmatprep.subr.mxu0 0.0
  %2249 = vmatpush1.msra.mxu0 0.0
  %2250 = vmatprep.subr.mxu0 0.0
  %2251 = vmatpush1.msra.mxu0 0.0
  %2252 = vmatprep.subr.mxu0 0.0
  %2253 = vmatpush1.msra.mxu0 0.0
  %2254 = vmatprep.subr.mxu0 0.0
  %2255 = vmatpush1.msra.mxu0 0.0
  %2256 = vmatprep.subr.mxu0 0.0
  %2257 = vmatpush1.msra.mxu0 0.0
  %2258 = vmatprep.subr.mxu0 0.0
  %v2259 = vand.u32 %v1973, 4294901760
  %2260 = vmatpush1.msra.mxu0 %v2259
  %2261 = vmatprep.subr.mxu0 0.0
  %v2262 = vand.u32 %v1972, 4294901760
  %2263 = vmatpush1.msra.mxu0 %v2262
  %2264 = vmatprep.subr.mxu0 0.0
  %v2265 = vand.u32 %v1971, 4294901760
  %2266 = vmatpush1.msra.mxu0 %v2265
  %2267 = vmatprep.subr.mxu0 0.0
  %v2268 = vand.u32 %v1970, 4294901760
  %2269 = vmatpush1.msra.mxu0 %v2268
  %2270 = vmatprep.subr.mxu0 0.0
  %2271 = vmatpush2.msra.mxu0 0.0
  %2272 = vmatprep.subr.mxu0 0.0
  %2273 = vmatpush2.msra.mxu0 0.0
  %2274 = vmatprep.subr.mxu0 0.0
  %2275 = vmatpush2.msra.mxu0 0.0
  %2276 = vmatprep.subr.mxu0 0.0
  %2277 = vmatpush2.msra.mxu0 0.0
  %2278 = vmatprep.subr.mxu0 0.0
  %2279 = vmatpush2.msra.mxu0 0.0
  %2280 = vmatprep.subr.mxu0 0.0
  %2281 = vmatpush2.msra.mxu0 0.0
  %2282 = vmatprep.subr.mxu0 0.0
  %2283 = vmatpush2.msra.mxu0 0.0
  %2284 = vmatprep.subr.mxu0 0.0
  %2285 = vmatpush2.msra.mxu0 0.0
  %2286 = vmatprep.subr.mxu0 0.0
  %2287 = vmatpush2.msra.mxu0 0.0
  %2288 = vmatprep.subr.mxu0 0.0
  %2289 = vmatpush2.msra.mxu0 0.0
  %2290 = vmatprep.subr.mxu0 0.0
  %2291 = vmatpush2.msra.mxu0 0.0
  %2292 = vmatprep.subr.mxu0 0.0
  %2293 = vmatpush2.msra.mxu0 0.0
  %2294 = vmatprep.subr.mxu0 0.0
  %2295 = vmatpush2.msra.mxu0 0.0
  %2296 = vmatprep.subr.mxu0 0.0
  %2297 = vmatpush2.msra.mxu0 0.0
  %2298 = vmatprep.subr.mxu0 0.0
  %2299 = vmatpush2.msra.mxu0 0.0
  %2300 = vmatprep.subr.mxu0 0.0
  %2301 = vmatpush2.msra.mxu0 0.0
  %2302 = vmatprep.mubr.f32.mxu0 0.0
  %v2303 = vand.u32 %v1982, 4294901760
  %v2304 = vsub.f32 %v1982, %v2303
  %v2305 = vand.u32 %v2304, 4294901760
  %2306 = vmatmul.mubr.f32.gmra.mxu0 %v2305
  %v2307 = vpop.f32.mrf.mxu0
  %v2308 = vadd.f32 %v2231, %v2307
  %v2309 = vpop.f32.mrf.mxu0
  %2310 = vdwg.mxu0
  %2311 = vmatprep.subr.mxu0 0.0
  %2312 = vmatpush1.msra.mxu0 0.0
  %2313 = vmatprep.subr.mxu0 0.0
  %2314 = vmatpush1.msra.mxu0 0.0
  %2315 = vmatprep.subr.mxu0 0.0
  %2316 = vmatpush1.msra.mxu0 0.0
  %2317 = vmatprep.subr.mxu0 0.0
  %2318 = vmatpush1.msra.mxu0 0.0
  %2319 = vmatprep.subr.mxu0 0.0
  %2320 = vmatpush1.msra.mxu0 0.0
  %2321 = vmatprep.subr.mxu0 0.0
  %2322 = vmatpush1.msra.mxu0 0.0
  %2323 = vmatprep.subr.mxu0 0.0
  %2324 = vmatpush1.msra.mxu0 0.0
  %2325 = vmatprep.subr.mxu0 0.0
  %2326 = vmatpush1.msra.mxu0 0.0
  %2327 = vmatprep.subr.mxu0 0.0
  %2328 = vmatpush1.msra.mxu0 0.0
  %2329 = vmatprep.subr.mxu0 0.0
  %2330 = vmatpush1.msra.mxu0 0.0
  %2331 = vmatprep.subr.mxu0 0.0
  %2332 = vmatpush1.msra.mxu0 0.0
  %2333 = vmatprep.subr.mxu0 0.0
  %2334 = vmatpush1.msra.mxu0 0.0
  %2335 = vmatprep.subr.mxu0 0.0
  %v2336 = vand.u32 %v1973, 4294901760
  %v2337 = vsub.f32 %v1973, %v2336
  %v2338 = vand.u32 %v2337, 4294901760
  %2339 = vmatpush1.msra.mxu0 %v2338
  %2340 = vmatprep.subr.mxu0 0.0
  %v2341 = vand.u32 %v1972, 4294901760
  %v2342 = vsub.f32 %v1972, %v2341
  %v2343 = vand.u32 %v2342, 4294901760
  %2344 = vmatpush1.msra.mxu0 %v2343
  %2345 = vmatprep.subr.mxu0 0.0
  %v2346 = vand.u32 %v1971, 4294901760
  %v2347 = vsub.f32 %v1971, %v2346
  %v2348 = vand.u32 %v2347, 4294901760
  %2349 = vmatpush1.msra.mxu0 %v2348
  %2350 = vmatprep.subr.mxu0 0.0
  %v2351 = vand.u32 %v1970, 4294901760
  %v2352 = vsub.f32 %v1970, %v2351
  %v2353 = vand.u32 %v2352, 4294901760
  %2354 = vmatpush1.msra.mxu0 %v2353
  %2355 = vmatprep.subr.mxu0 0.0
  %2356 = vmatpush2.msra.mxu0 0.0
  %2357 = vmatprep.subr.mxu0 0.0
  %2358 = vmatpush2.msra.mxu0 0.0
  %2359 = vmatprep.subr.mxu0 0.0
  %2360 = vmatpush2.msra.mxu0 0.0
  %2361 = vmatprep.subr.mxu0 0.0
  %2362 = vmatpush2.msra.mxu0 0.0
  %2363 = vmatprep.subr.mxu0 0.0
  %2364 = vmatpush2.msra.mxu0 0.0
  %2365 = vmatprep.subr.mxu0 0.0
  %2366 = vmatpush2.msra.mxu0 0.0
  %2367 = vmatprep.subr.mxu0 0.0
  %2368 = vmatpush2.msra.mxu0 0.0
  %2369 = vmatprep.subr.mxu0 0.0
  %2370 = vmatpush2.msra.mxu0 0.0
  %2371 = vmatprep.subr.mxu0 0.0
  %2372 = vmatpush2.msra.mxu0 0.0
  %2373 = vmatprep.subr.mxu0 0.0
  %2374 = vmatpush2.msra.mxu0 0.0
  %2375 = vmatprep.subr.mxu0 0.0
  %2376 = vmatpush2.msra.mxu0 0.0
  %2377 = vmatprep.subr.mxu0 0.0
  %2378 = vmatpush2.msra.mxu0 0.0
  %2379 = vmatprep.subr.mxu0 0.0
  %2380 = vmatpush2.msra.mxu0 0.0
  %2381 = vmatprep.subr.mxu0 0.0
  %2382 = vmatpush2.msra.mxu0 0.0
  %2383 = vmatprep.subr.mxu0 0.0
  %2384 = vmatpush2.msra.mxu0 0.0
  %2385 = vmatprep.subr.mxu0 0.0
  %2386 = vmatpush2.msra.mxu0 0.0
  %2387 = vmatprep.mubr.f32.mxu0 0.0
  %v2388 = vand.u32 %v1982, 4294901760
  %2389 = vmatmul.mubr.f32.gmra.mxu0 %v2388
  %v2390 = vpop.f32.mrf.mxu0
  %v2391 = vadd.f32 %v2308, %v2390
  %v2392 = vpop.f32.mrf.mxu0
  %2393 = vdwg.mxu0
  %2394 = vmatprep.subr.mxu0 0.0
  %2395 = vmatpush1.msra.mxu0 0.0
  %2396 = vmatprep.subr.mxu0 0.0
  %2397 = vmatpush1.msra.mxu0 0.0
  %2398 = vmatprep.subr.mxu0 0.0
  %2399 = vmatpush1.msra.mxu0 0.0
  %2400 = vmatprep.subr.mxu0 0.0
  %2401 = vmatpush1.msra.mxu0 0.0
  %2402 = vmatprep.subr.mxu0 0.0
  %2403 = vmatpush1.msra.mxu0 0.0
  %2404 = vmatprep.subr.mxu0 0.0
  %2405 = vmatpush1.msra.mxu0 0.0
  %2406 = vmatprep.subr.mxu0 0.0
  %2407 = vmatpush1.msra.mxu0 0.0
  %2408 = vmatprep.subr.mxu0 0.0
  %2409 = vmatpush1.msra.mxu0 0.0
  %2410 = vmatprep.subr.mxu0 0.0
  %2411 = vmatpush1.msra.mxu0 0.0
  %2412 = vmatprep.subr.mxu0 0.0
  %2413 = vmatpush1.msra.mxu0 0.0
  %2414 = vmatprep.subr.mxu0 0.0
  %2415 = vmatpush1.msra.mxu0 0.0
  %2416 = vmatprep.subr.mxu0 0.0
  %2417 = vmatpush1.msra.mxu0 0.0
  %2418 = vmatprep.subr.mxu0 0.0
  %v2419 = vand.u32 %v1973, 4294901760
  %2420 = vmatpush1.msra.mxu0 %v2419
  %2421 = vmatprep.subr.mxu0 0.0
  %v2422 = vand.u32 %v1972, 4294901760
  %2423 = vmatpush1.msra.mxu0 %v2422
  %2424 = vmatprep.subr.mxu0 0.0
  %v2425 = vand.u32 %v1971, 4294901760
  %2426 = vmatpush1.msra.mxu0 %v2425
  %2427 = vmatprep.subr.mxu0 0.0
  %v2428 = vand.u32 %v1970, 4294901760
  %2429 = vmatpush1.msra.mxu0 %v2428
  %2430 = vmatprep.subr.mxu0 0.0
  %2431 = vmatpush2.msra.mxu0 0.0
  %2432 = vmatprep.subr.mxu0 0.0
  %2433 = vmatpush2.msra.mxu0 0.0
  %2434 = vmatprep.subr.mxu0 0.0
  %2435 = vmatpush2.msra.mxu0 0.0
  %2436 = vmatprep.subr.mxu0 0.0
  %2437 = vmatpush2.msra.mxu0 0.0
  %2438 = vmatprep.subr.mxu0 0.0
  %2439 = vmatpush2.msra.mxu0 0.0
  %2440 = vmatprep.subr.mxu0 0.0
  %2441 = vmatpush2.msra.mxu0 0.0
  %2442 = vmatprep.subr.mxu0 0.0
  %2443 = vmatpush2.msra.mxu0 0.0
  %2444 = vmatprep.subr.mxu0 0.0
  %2445 = vmatpush2.msra.mxu0 0.0
  %2446 = vmatprep.subr.mxu0 0.0
  %2447 = vmatpush2.msra.mxu0 0.0
  %2448 = vmatprep.subr.mxu0 0.0
  %2449 = vmatpush2.msra.mxu0 0.0
  %2450 = vmatprep.subr.mxu0 0.0
  %2451 = vmatpush2.msra.mxu0 0.0
  %2452 = vmatprep.subr.mxu0 0.0
  %2453 = vmatpush2.msra.mxu0 0.0
  %2454 = vmatprep.subr.mxu0 0.0
  %2455 = vmatpush2.msra.mxu0 0.0
  %2456 = vmatprep.subr.mxu0 0.0
  %2457 = vmatpush2.msra.mxu0 0.0
  %2458 = vmatprep.subr.mxu0 0.0
  %2459 = vmatpush2.msra.mxu0 0.0
  %2460 = vmatprep.subr.mxu0 0.0
  %2461 = vmatpush2.msra.mxu0 0.0
  %2462 = vmatprep.mubr.f32.mxu0 0.0
  %v2463 = vand.u32 %v1982, 4294901760
  %2464 = vmatmul.mubr.f32.gmra.mxu0 %v2463
  %v2465 = vpop.f32.mrf.mxu0
  %v2466 = vadd.f32 %v2391, %v2465
  %v2467 = vpop.f32.mrf.mxu0
  %2468 = vdwg.mxu0
  %2469 = vst [vmem:[%s9] sm:$0x3] %v2466
  // Predicated region
  $region38: #{mlp_forward.1} parent=0 // pred_check
    _
  $region39: #{mlp_forward.1} parent=0 // pred_check_branch
    %2471 = sbr.rel (0) target = $region41
  $region40: #{mlp_forward.1} parent=0 // pred_region
    _
  $region41: #{mlp_forward.1} parent=0 // pred_fallthru
    _
  // Predicated region
  $region42: #{mlp_forward.1} parent=0 // pred_check
    _
  $region43: #{mlp_forward.1} parent=0 // pred_check_branch
    %2473 = sbr.rel (0) target = $region45
  $region44: #{mlp_forward.1} parent=0 // pred_region
    _
  $region45: #{mlp_forward.1} parent=0 // pred_fallthru
    _

</llo_original>
